<compile_context>
chip_gen: v7x
topology: tpu7x:2x2x1
jax: 0.10.0
libtpu: 0.0.40
codegen_flags: <defaults>
</compile_context>

<pallas_src>
import jax
import jax.numpy as jnp
import numpy as np
from jax.experimental import pallas as pl
from jax.experimental.pallas import tpu as pltpu

BN_EPS = 1e-5
LRELU_SLOPE = 0.2
LANES = 128

# bf16 storage for X / w_xcat halves the dominant HBM bytes and gives
# single-pass MXU issue on v5e/v6e/v7x; all post-matmul math stays f32.
MATMUL_DTYPE = jnp.bfloat16


# -----------------------------------------------------------------------------
# Parameter construction (natural shapes, weights stored as [in, out])
# -----------------------------------------------------------------------------
def init_discriminator_params(key, z_dim):
    h4 = 4 * z_dim
    D = 28 * 28
    keys = iter(jax.random.split(key, 11))

    def lin(fan_in, fan_out):
        w = 0.02 * jax.random.normal(next(keys), (fan_in, fan_out), jnp.float32)
        return w, jnp.zeros((fan_out,), jnp.float32)

    def bn(dim):
        return jnp.ones((dim,), jnp.float32), jnp.zeros((dim,), jnp.float32)

    p = {}
    # xlayer: Lin(784,4z) BN ReLU  Lin(4z,4z) BN ReLU  Lin(4z,1)
    p["x_w1"], p["x_b1"] = lin(D, h4);   p["x_g1"], p["x_be1"] = bn(h4)
    p["x_w2"], p["x_b2"] = lin(h4, h4);  p["x_g2"], p["x_be2"] = bn(h4)
    p["x_w3"], p["x_b3"] = lin(h4, 1)
    # zlayer: Lin(z,z) BN LReLU  Lin(z,1)
    p["z_w1"], p["z_b1"] = lin(z_dim, z_dim); p["z_g1"], p["z_be1"] = bn(z_dim)
    p["z_w2"], p["z_b2"] = lin(z_dim, 1)
    # xflayer: 3 x (Lin BN LReLU), 784->4z->4z->4z
    p["xf_w1"], p["xf_b1"] = lin(D, h4);  p["xf_g1"], p["xf_be1"] = bn(h4)
    p["xf_w2"], p["xf_b2"] = lin(h4, h4); p["xf_g2"], p["xf_be2"] = bn(h4)
    p["xf_w3"], p["xf_b3"] = lin(h4, h4); p["xf_g3"], p["xf_be3"] = bn(h4)
    # zflayer: 3 x (Lin BN LReLU), z->z->4z->4z
    p["zf_w1"], p["zf_b1"] = lin(z_dim, z_dim); p["zf_g1"], p["zf_be1"] = bn(z_dim)
    p["zf_w2"], p["zf_b2"] = lin(z_dim, h4);    p["zf_g2"], p["zf_be2"] = bn(h4)
    p["zf_w3"], p["zf_b3"] = lin(h4, h4);       p["zf_g3"], p["zf_be3"] = bn(h4)
    return p


# -----------------------------------------------------------------------------
# Host-side packing: ~40 tiny arrays -> 6 slabs + static layout table
# -----------------------------------------------------------------------------
def _block_diag(a, b):
    ra, ca = a.shape
    rb, cb = b.shape
    top = jnp.concatenate([a, jnp.zeros((ra, cb), a.dtype)], axis=1)
    bot = jnp.concatenate([jnp.zeros((rb, ca), b.dtype), b], axis=1)
    return jnp.concatenate([top, bot], axis=0)


def pack_params(p, z_dim, batch):
    h4 = 4 * z_dim
    h8 = 2 * h4
    f32 = jnp.float32

    # ---- fused / block-diagonal MXU weight slabs (no in-kernel lane slicing)
    w_xcat = jnp.concatenate([p["x_w1"], p["xf_w1"]], axis=1)        # [784, 2h]
    w_mid2 = _block_diag(p["x_w2"], p["xf_w2"])                      # [2h, 2h]
    w_mid3 = jnp.concatenate([                                       # [3h, 2h]
        jnp.zeros((h4, h8), f32),                       # kills a2's x half
        jnp.concatenate([p["xf_w3"], jnp.zeros((h4, h4), f32)], axis=1),
        jnp.concatenate([jnp.zeros((h4, h4), f32), p["zf_w3"]], axis=1),
    ], axis=0)
    w_z1cat = jnp.concatenate([p["z_w1"], p["zf_w1"]], axis=1)       # [z, 2z]
    w_zf2 = jnp.concatenate([jnp.zeros((z_dim, h4), f32),            # [2z, h]
                             p["zf_w2"]], axis=0)       # zero rows kill z half

    # ---- vector slab: one pre-broadcast [batch, 128] row per bias/gamma/
    #      beta/slope/head-weight -> every in-kernel use is a plain vld.
    rows, layout = [], {}

    def add(name, vec):
        vec = jnp.asarray(vec, f32).reshape(-1)
        layout[name] = (len(rows), int(vec.shape[0]))
        row = jnp.pad(vec, (0, LANES - vec.shape[0]))
        rows.append(jnp.broadcast_to(row[None, :], (batch, LANES)))

    zeros_h4 = jnp.zeros((h4,), f32)
    zeros_z = jnp.zeros((z_dim,), f32)

    add("b1x", jnp.concatenate([p["x_b1"], p["xf_b1"]]))
    add("g1x", jnp.concatenate([p["x_g1"], p["xf_g1"]]))
    add("be1x", jnp.concatenate([p["x_be1"], p["xf_be1"]]))
    add("slope_x", jnp.concatenate([zeros_h4,
                                    jnp.full((h4,), LRELU_SLOPE, f32)]))
    add("b2x", jnp.concatenate([p["x_b2"], p["xf_b2"]]))
    add("g2x", jnp.concatenate([p["x_g2"], p["xf_g2"]]))
    add("be2x", jnp.concatenate([p["x_be2"], p["xf_be2"]]))
    add("w_x3", jnp.concatenate([p["x_w3"][:, 0], zeros_h4]))     # Tx head row
    add("tb", jnp.concatenate([p["x_b3"], p["z_b2"]]))            # [b_x3, b_z2]
    add("b1z", jnp.concatenate([p["z_b1"], p["zf_b1"]]))
    add("g1z", jnp.concatenate([p["z_g1"], p["zf_g1"]]))
    add("be1z", jnp.concatenate([p["z_be1"], p["zf_be1"]]))
    add("w_z2", jnp.concatenate([p["z_w2"][:, 0], zeros_z]))      # Tz head row
    add("b_zf2", p["zf_b2"]); add("g_zf2", p["zf_g2"]); add("be_zf2", p["zf_be2"])
    add("b3", jnp.concatenate([p["xf_b3"], p["zf_b3"]]))
    add("g3", jnp.concatenate([p["xf_g3"], p["zf_g3"]]))
    add("be3", jnp.concatenate([p["xf_be3"], p["zf_be3"]]))

    vec = jnp.stack(rows, axis=0)                                 # [R, B, 128]

    packed = dict(
        w_xcat=w_xcat.astype(MATMUL_DTYPE),
        w_mid2=w_mid2,
        w_mid3=w_mid3,
        w_z1cat=w_z1cat,
        w_zf2=w_zf2,
        vec=vec,
    )
    return packed, layout


# -----------------------------------------------------------------------------
# Pallas kernel (closure over the static layout table)
# -----------------------------------------------------------------------------
def _make_kernel(layout, batch, z_dim):
    h4 = 4 * z_dim
    h8 = 2 * h4

    def kernel(wxcat_hbm, x_ref, z_ref, wz1_ref, wzf2_ref, wmid2_ref,
               wmid3_ref, vec_ref, o_ref, wxcat_vmem, dma_sem):
        # Kick off the big (bf16, ~100 KiB) first-layer weight copy; the
        # z branch below does not depend on it, so it hides the DMA latency.
        wx_cp = pltpu.make_async_copy(wxcat_hbm, wxcat_vmem, dma_sem)
        wx_cp.start()

        def v(name):                     # [B, w], already batch-broadcast rows
            r, w = layout[name]
            return vec_ref[r][:, :w]

        def bn_act(h, g, be, slope):
            # Training-mode BatchNorm1d (biased batch variance), one-pass form,
            # fused with max(h, slope*h): slope 0 -> ReLU, 0.2 -> LeakyReLU.
            mean = jnp.mean(h, axis=0, keepdims=True)
            msq = jnp.mean(h * h, axis=0, keepdims=True)
            var = jnp.maximum(msq - mean * mean, 0.0)
            hn = (h - mean) * jax.lax.rsqrt(var + BN_EPS) * v(g) + v(be)
            return jnp.maximum(hn, slope * hn)

        dot = lambda a, b: jnp.dot(a, b, preferred_element_type=jnp.float32)

        # ----------------- z branch (hidden under the w_xcat DMA) -----------
        Z = z_ref[...].astype(jnp.float32)                       # [B, z]
        zsq = jnp.sum(Z * Z, axis=1, keepdims=True)              # [B, 1]
        tb = v("tb")                                             # [B, 2]

        hz1 = dot(Z, wz1_ref[...]) + v("b1z")                    # [B, 2z]
        b1 = bn_act(hz1, "g1z", "be1z", LRELU_SLOPE)             # [B, 2z]
        Tz = jnp.sum(b1 * v("w_z2"), axis=1, keepdims=True) + tb[:, 1:2]
        # zflayer L2: zero rows in w_zf2 select the zf half of b1 (no slice).
        b2 = bn_act(dot(b1, wzf2_ref[...]) + v("b_zf2"),
                    "g_zf2", "be_zf2", LRELU_SLOPE)              # [B, h4]

        # ----------------- x branch -----------------------------------------
        wx_cp.wait()
        slope_x = v("slope_x")                        # ReLU half | LReLU half
        hx1 = dot(x_ref[...], wxcat_vmem[...]) + v("b1x")        # [B, 2h4] f32
        a1 = bn_act(hx1, "g1x", "be1x", slope_x)
        a2 = bn_act(dot(a1, wmid2_ref[...]) + v("b2x"),
                    "g2x", "be2x", slope_x)                      # [B, 2h4]
        Tx = jnp.sum(a2 * v("w_x3"), axis=1, keepdims=True) + tb[:, 0:1]

        # ----------------- fused third layer: xf_w3 (+) zf_w3 ---------------
        h3 = dot(jnp.concatenate([a2, b2], axis=1), wmid3_ref[...]) + v("b3")
        hxz = bn_act(h3, "g3", "be3", LRELU_SLOPE)               # [Hx | Hz]

        H = (jnp.sum(hxz[:, :h4] * hxz[:, h4:h8], axis=1, keepdims=True)
             + Tx + Tz - 0.5 * zsq)                              # [B, 1]
        sig = jax.nn.sigmoid(H)

        # Lane-dense (1, B) output via a relayout-free one-hot "transpose".
        rows = jax.lax.broadcasted_iota(jnp.int32, (batch, batch), 0)
        cols = jax.lax.broadcasted_iota(jnp.int32, (batch, batch), 1)
        onehot = (rows == cols).astype(jnp.float32)
        o_ref[...] = jnp.sum(sig * onehot, axis=0, keepdims=True)  # [1, B]

    return kernel


# -----------------------------------------------------------------------------
# Wrapper
# -----------------------------------------------------------------------------
def discriminator_forward(X_nchw, Z, packed, layout, z_dim):
    B = X_nchw.shape[0]
    D = int(np.prod(X_nchw.shape[1:]))
    h4 = 4 * z_dim
    h8 = 2 * h4

    X_flat = X_nchw.reshape(B, D).astype(MATMUL_DTYPE)   # [B, 784] bf16
    Z = Z.astype(jnp.float32)

    inputs = (packed["w_xcat"], X_flat, Z, packed["w_z1cat"], packed["w_zf2"],
              packed["w_mid2"], packed["w_mid3"], packed["vec"])

    flops = 2 * B * (D * h8                 # fused K=784 matmul
                     + h8 * h8              # block-diag x_w2 (+) xf_w2
                     + 3 * h4 * h8          # block-diag xf_w3 (+) zf_w3
                     + z_dim * 2 * z_dim    # fused z matmul
                     + 2 * z_dim * h4       # zero-padded zf_w2
                     + h8 + 2 * z_dim + h4)  # Tx/Tz heads + Hx*Hz reduce
    transcendentals = 3 * h8 + 2 * z_dim + h4 + B   # BN rsqrt cols + sigmoid
    bytes_accessed = (sum(int(a.size) * a.dtype.itemsize for a in inputs)
                      + B * 4)

    kernel = _make_kernel(layout, B, z_dim)
    vmem_spec = pl.BlockSpec(memory_space=pltpu.MemorySpace.VMEM)
    out = pl.pallas_call(
        kernel,
        out_shape=jax.ShapeDtypeStruct((1, B), jnp.float32),
        in_specs=[pl.BlockSpec(memory_space=pl.ANY)]       # w_xcat: manual DMA
                 + [vmem_spec] * (len(inputs) - 1),
        out_specs=pl.BlockSpec(memory_space=pltpu.MemorySpace.VMEM),
        scratch_shapes=[pltpu.VMEM((D, h8), MATMUL_DTYPE),  # w_xcat landing buf
                        pltpu.SemaphoreType.DMA(())],
        cost_estimate=pl.CostEstimate(flops=int(flops),
                                      transcendentals=int(transcendentals),
                                      bytes_accessed=int(bytes_accessed)),
        # TODO(synk): for large B on v7x add a leading "parallel" batch grid
        # axis (dimension_semantics=("parallel",)) so both TensorCores split
        # the batch; gridless is optimal at B=8.
    )(*inputs)
    return out[0]   # [B], matches torch.squeeze semantics


# -----------------------------------------------------------------------------
# Pure-JAX reference (natural params, f32 HIGHEST) — validates packing + kernel
# -----------------------------------------------------------------------------
def _reference_forward(X_nchw, Z, p):
    # TODO(synk): BatchNorm uses training-mode batch statistics only (matches
    # PyTorch .train() forward); running-stat tracking / eval() mode omitted.
    B = X_nchw.shape[0]
    X = X_nchw.reshape(B, -1).astype(jnp.float32)
    Z = Z.astype(jnp.float32)
    hp = jax.lax.Precision.HIGHEST
    lin = lambda h, w, b: jnp.dot(h, w, precision=hp) + b

    def bn(h, g, be):
        m = jnp.mean(h, axis=0, keepdims=True)
        v_ = jnp.mean((h - m) ** 2, axis=0, keepdims=True)
        return (h - m) / jnp.sqrt(v_ + BN_EPS) * g + be

    relu = lambda h: jnp.maximum(h, 0.0)
    lrelu = lambda h: jnp.where(h > 0, h, LRELU_SLOPE * h)

    h = relu(bn(lin(X, p["x_w1"], p["x_b1"]), p["x_g1"], p["x_be1"]))
    h = relu(bn(lin(h, p["x_w2"], p["x_b2"]), p["x_g2"], p["x_be2"]))
    Tx = lin(h, p["x_w3"], p["x_b3"])
    h = lrelu(bn(lin(Z, p["z_w1"], p["z_b1"]), p["z_g1"], p["z_be1"]))
    Tz = lin(h, p["z_w2"], p["z_b2"])
    h = lrelu(bn(lin(X, p["xf_w1"], p["xf_b1"]), p["xf_g1"], p["xf_be1"]))
    h = lrelu(bn(lin(h, p["xf_w2"], p["xf_b2"]), p["xf_g2"], p["xf_be2"]))
    Hx = lrelu(bn(lin(h, p["xf_w3"], p["xf_b3"]), p["xf_g3"], p["xf_be3"]))
    h = lrelu(bn(lin(Z, p["zf_w1"], p["zf_b1"]), p["zf_g1"], p["zf_be1"]))
    h = lrelu(bn(lin(h, p["zf_w2"], p["zf_b2"]), p["zf_g2"], p["zf_be2"]))
    Hz = lrelu(bn(lin(h, p["zf_w3"], p["zf_b3"]), p["zf_g3"], p["zf_be3"]))

    H = jnp.sum(Hx * Hz, axis=1) + (Tx + Tz)[:, 0] - 0.5 * jnp.sum(Z * Z, axis=1)
    return jax.nn.sigmoid(H)


if __name__ == "__main__":
    B = 8          # batch_size
    Z_DIM = 8      # z_dim  (4*z_dim = 32)

    key = jax.random.PRNGKey(0)
    kx, kz, kp = jax.random.split(key, 3)

    X = jax.random.normal(kx, (B, 1, 28, 28), jnp.float32)   # NCHW, like PyTorch
    Z = jax.random.normal(kz, (B, Z_DIM), jnp.float32)
    params = init_discriminator_params(kp, Z_DIM)
    packed, layout = pack_params(params, Z_DIM, B)

    y = jax.block_until_ready(discriminator_forward(X, Z, packed, layout, Z_DIM))
    y_ref = jax.block_until_ready(_reference_forward(X, Z, params))

    assert y.shape == (B,)
    assert bool(jnp.all(jnp.isfinite(y)))
    # bf16-stored first-layer operands vs an f32 HIGHEST reference: 1e-2 bound;
    # with MATMUL_DTYPE=f32 the original 5e-3 bound applies.
    tol = 1e-2 if MATMUL_DTYPE == jnp.bfloat16 else 5e-3
    np.testing.assert_allclose(np.asarray(y), np.asarray(y_ref),
                               rtol=tol, atol=tol)
    print("KERNEL_OK")
</pallas_src>

<mosaic_0001>
module attributes {stable_mosaic.version = 11 : i64} {
  func.func @kernel(%arg0: memref<784x64xbf16, #tpu.memory_space<any>>, %arg1: memref<8x784xbf16, #tpu.memory_space<vmem>>, %arg2: memref<8x8xf32, #tpu.memory_space<vmem>>, %arg3: memref<8x16xf32, #tpu.memory_space<vmem>>, %arg4: memref<16x32xf32, #tpu.memory_space<vmem>>, %arg5: memref<64x64xf32, #tpu.memory_space<vmem>>, %arg6: memref<96x64xf32, #tpu.memory_space<vmem>>, %arg7: memref<19x8x128xf32, #tpu.memory_space<vmem>>, %arg8: memref<1x8xf32, #tpu.memory_space<vmem>>, %arg9: memref<784x64xbf16, #tpu.memory_space<vmem>>, %arg10: memref<!tpu.dma_semaphore, #tpu.memory_space<semaphore_mem>>) attributes {dimension_semantics = [], scalar_prefetch = 0 : i64, scratch_operands = 2 : i64, tpu.core_type = #tpu.core_type<tc>} {
    tpu.enqueue_dma source(%arg0 : memref<784x64xbf16, #tpu.memory_space<any>>) target(%arg9 : memref<784x64xbf16, #tpu.memory_space<vmem>>) target_semaphore(%arg10 : memref<!tpu.dma_semaphore, #tpu.memory_space<semaphore_mem>>)
    %c0 = arith.constant 0 : index
    %c0_0 = arith.constant 0 : index
    %0 = vector.load %arg2[%c0, %c0_0] : memref<8x8xf32, #tpu.memory_space<vmem>>, vector<8x8xf32>
    %1 = arith.mulf %0, %0 : vector<8x8xf32>
    %cst = arith.constant dense<0.000000e+00> : vector<8xf32>
    %2 = vector.multi_reduction <add>, %1, %cst [1] : vector<8x8xf32> to vector<8xf32>
    %3 = vector.shape_cast %2 : vector<8xf32> to vector<8x1xf32>
    %c8 = arith.constant 8 : index
    %c0_1 = arith.constant 0 : index
    %c0_2 = arith.constant 0 : index
    %4 = vector.load %arg7[%c8, %c0_1, %c0_2] : memref<19x8x128xf32, #tpu.memory_space<vmem>>, vector<1x8x128xf32>
    %5 = vector.shape_cast %4 : vector<1x8x128xf32> to vector<8x128xf32>
    %6 = vector.extract_strided_slice %5 {offsets = [0, 0], sizes = [8, 2], strides = [1, 1]} : vector<8x128xf32> to vector<8x2xf32>
    %c0_3 = arith.constant 0 : index
    %c0_4 = arith.constant 0 : index
    %7 = vector.load %arg3[%c0_3, %c0_4] : memref<8x16xf32, #tpu.memory_space<vmem>>, vector<8x16xf32>
    %cst_5 = arith.constant dense<0.000000e+00> : vector<8x16xf32>
    %8 = tpu.matmul %0, %7, %cst_5 {dimension_numbers = #tpu.dot_dimension_numbers<[1], [0], [0], [1], [0, 0, 1, 1], [], []>} : vector<8x8xf32>, vector<8x16xf32>, vector<8x16xf32> -> vector<8x16xf32>
    %c9 = arith.constant 9 : index
    %c0_6 = arith.constant 0 : index
    %c0_7 = arith.constant 0 : index
    %9 = vector.load %arg7[%c9, %c0_6, %c0_7] : memref<19x8x128xf32, #tpu.memory_space<vmem>>, vector<1x8x128xf32>
    %10 = vector.shape_cast %9 : vector<1x8x128xf32> to vector<8x128xf32>
    %11 = vector.extract_strided_slice %10 {offsets = [0, 0], sizes = [8, 16], strides = [1, 1]} : vector<8x128xf32> to vector<8x16xf32>
    %12 = arith.addf %8, %11 : vector<8x16xf32>
    %cst_8 = arith.constant dense<0.000000e+00> : vector<16xf32>
    %13 = vector.multi_reduction <add>, %12, %cst_8 [0] : vector<8x16xf32> to vector<16xf32>
    %14 = vector.shape_cast %13 : vector<16xf32> to vector<1x16xf32>
    %cst_9 = arith.constant 8.000000e+00 : f32
    %15 = vector.broadcast %cst_9 : f32 to vector<1x16xf32>
    %16 = arith.divf %14, %15 : vector<1x16xf32>
    %17 = arith.mulf %12, %12 : vector<8x16xf32>
    %cst_10 = arith.constant dense<0.000000e+00> : vector<16xf32>
    %18 = vector.multi_reduction <add>, %17, %cst_10 [0] : vector<8x16xf32> to vector<16xf32>
    %19 = vector.shape_cast %18 : vector<16xf32> to vector<1x16xf32>
    %cst_11 = arith.constant 8.000000e+00 : f32
    %20 = vector.broadcast %cst_11 : f32 to vector<1x16xf32>
    %21 = arith.divf %19, %20 : vector<1x16xf32>
    %22 = arith.mulf %16, %16 : vector<1x16xf32>
    %23 = arith.subf %21, %22 : vector<1x16xf32>
    %cst_12 = arith.constant 0.000000e+00 : f32
    %24 = vector.broadcast %cst_12 : f32 to vector<1x16xf32>
    %25 = arith.maximumf %23, %24 : vector<1x16xf32>
    %26 = vector.broadcast %16 : vector<1x16xf32> to vector<8x16xf32>
    %27 = arith.subf %12, %26 : vector<8x16xf32>
    %cst_13 = arith.constant 9.99999974E-6 : f32
    %28 = vector.broadcast %cst_13 : f32 to vector<1x16xf32>
    %29 = arith.addf %25, %28 : vector<1x16xf32>
    %30 = math.rsqrt %29 : vector<1x16xf32>
    %31 = vector.broadcast %30 : vector<1x16xf32> to vector<8x16xf32>
    %32 = arith.mulf %27, %31 : vector<8x16xf32>
    %c10 = arith.constant 10 : index
    %c0_14 = arith.constant 0 : index
    %c0_15 = arith.constant 0 : index
    %33 = vector.load %arg7[%c10, %c0_14, %c0_15] : memref<19x8x128xf32, #tpu.memory_space<vmem>>, vector<1x8x128xf32>
    %34 = vector.shape_cast %33 : vector<1x8x128xf32> to vector<8x128xf32>
    %35 = vector.extract_strided_slice %34 {offsets = [0, 0], sizes = [8, 16], strides = [1, 1]} : vector<8x128xf32> to vector<8x16xf32>
    %36 = arith.mulf %32, %35 : vector<8x16xf32>
    %c11 = arith.constant 11 : index
    %c0_16 = arith.constant 0 : index
    %c0_17 = arith.constant 0 : index
    %37 = vector.load %arg7[%c11, %c0_16, %c0_17] : memref<19x8x128xf32, #tpu.memory_space<vmem>>, vector<1x8x128xf32>
    %38 = vector.shape_cast %37 : vector<1x8x128xf32> to vector<8x128xf32>
    %39 = vector.extract_strided_slice %38 {offsets = [0, 0], sizes = [8, 16], strides = [1, 1]} : vector<8x128xf32> to vector<8x16xf32>
    %40 = arith.addf %36, %39 : vector<8x16xf32>
    %cst_18 = arith.constant 2.000000e-01 : f32
    %41 = vector.broadcast %cst_18 : f32 to vector<8x16xf32>
    %42 = arith.mulf %41, %40 : vector<8x16xf32>
    %43 = arith.maximumf %40, %42 : vector<8x16xf32>
    %c12 = arith.constant 12 : index
    %c0_19 = arith.constant 0 : index
    %c0_20 = arith.constant 0 : index
    %44 = vector.load %arg7[%c12, %c0_19, %c0_20] : memref<19x8x128xf32, #tpu.memory_space<vmem>>, vector<1x8x128xf32>
    %45 = vector.shape_cast %44 : vector<1x8x128xf32> to vector<8x128xf32>
    %46 = vector.extract_strided_slice %45 {offsets = [0, 0], sizes = [8, 16], strides = [1, 1]} : vector<8x128xf32> to vector<8x16xf32>
    %47 = arith.mulf %43, %46 : vector<8x16xf32>
    %cst_21 = arith.constant dense<0.000000e+00> : vector<8xf32>
    %48 = vector.multi_reduction <add>, %47, %cst_21 [1] : vector<8x16xf32> to vector<8xf32>
    %49 = vector.shape_cast %48 : vector<8xf32> to vector<8x1xf32>
    %50 = vector.extract_strided_slice %6 {offsets = [0, 1], sizes = [8, 1], strides = [1, 1]} : vector<8x2xf32> to vector<8x1xf32>
    %51 = arith.addf %49, %50 : vector<8x1xf32>
    %c0_22 = arith.constant 0 : index
    %c0_23 = arith.constant 0 : index
    %52 = vector.load %arg4[%c0_22, %c0_23] : memref<16x32xf32, #tpu.memory_space<vmem>>, vector<16x32xf32>
    %cst_24 = arith.constant dense<0.000000e+00> : vector<8x32xf32>
    %53 = tpu.matmul %43, %52, %cst_24 {dimension_numbers = #tpu.dot_dimension_numbers<[1], [0], [0], [1], [0, 0, 1, 1], [], []>} : vector<8x16xf32>, vector<16x32xf32>, vector<8x32xf32> -> vector<8x32xf32>
    %c13 = arith.constant 13 : index
    %c0_25 = arith.constant 0 : index
    %c0_26 = arith.constant 0 : index
    %54 = vector.load %arg7[%c13, %c0_25, %c0_26] : memref<19x8x128xf32, #tpu.memory_space<vmem>>, vector<1x8x128xf32>
    %55 = vector.shape_cast %54 : vector<1x8x128xf32> to vector<8x128xf32>
    %56 = vector.extract_strided_slice %55 {offsets = [0, 0], sizes = [8, 32], strides = [1, 1]} : vector<8x128xf32> to vector<8x32xf32>
    %57 = arith.addf %53, %56 : vector<8x32xf32>
    %cst_27 = arith.constant dense<0.000000e+00> : vector<32xf32>
    %58 = vector.multi_reduction <add>, %57, %cst_27 [0] : vector<8x32xf32> to vector<32xf32>
    %59 = vector.shape_cast %58 : vector<32xf32> to vector<1x32xf32>
    %cst_28 = arith.constant 8.000000e+00 : f32
    %60 = vector.broadcast %cst_28 : f32 to vector<1x32xf32>
    %61 = arith.divf %59, %60 : vector<1x32xf32>
    %62 = arith.mulf %57, %57 : vector<8x32xf32>
    %cst_29 = arith.constant dense<0.000000e+00> : vector<32xf32>
    %63 = vector.multi_reduction <add>, %62, %cst_29 [0] : vector<8x32xf32> to vector<32xf32>
    %64 = vector.shape_cast %63 : vector<32xf32> to vector<1x32xf32>
    %cst_30 = arith.constant 8.000000e+00 : f32
    %65 = vector.broadcast %cst_30 : f32 to vector<1x32xf32>
    %66 = arith.divf %64, %65 : vector<1x32xf32>
    %67 = arith.mulf %61, %61 : vector<1x32xf32>
    %68 = arith.subf %66, %67 : vector<1x32xf32>
    %cst_31 = arith.constant 0.000000e+00 : f32
    %69 = vector.broadcast %cst_31 : f32 to vector<1x32xf32>
    %70 = arith.maximumf %68, %69 : vector<1x32xf32>
    %71 = vector.broadcast %61 : vector<1x32xf32> to vector<8x32xf32>
    %72 = arith.subf %57, %71 : vector<8x32xf32>
    %cst_32 = arith.constant 9.99999974E-6 : f32
    %73 = vector.broadcast %cst_32 : f32 to vector<1x32xf32>
    %74 = arith.addf %70, %73 : vector<1x32xf32>
    %75 = math.rsqrt %74 : vector<1x32xf32>
    %76 = vector.broadcast %75 : vector<1x32xf32> to vector<8x32xf32>
    %77 = arith.mulf %72, %76 : vector<8x32xf32>
    %c14 = arith.constant 14 : index
    %c0_33 = arith.constant 0 : index
    %c0_34 = arith.constant 0 : index
    %78 = vector.load %arg7[%c14, %c0_33, %c0_34] : memref<19x8x128xf32, #tpu.memory_space<vmem>>, vector<1x8x128xf32>
    %79 = vector.shape_cast %78 : vector<1x8x128xf32> to vector<8x128xf32>
    %80 = vector.extract_strided_slice %79 {offsets = [0, 0], sizes = [8, 32], strides = [1, 1]} : vector<8x128xf32> to vector<8x32xf32>
    %81 = arith.mulf %77, %80 : vector<8x32xf32>
    %c15 = arith.constant 15 : index
    %c0_35 = arith.constant 0 : index
    %c0_36 = arith.constant 0 : index
    %82 = vector.load %arg7[%c15, %c0_35, %c0_36] : memref<19x8x128xf32, #tpu.memory_space<vmem>>, vector<1x8x128xf32>
    %83 = vector.shape_cast %82 : vector<1x8x128xf32> to vector<8x128xf32>
    %84 = vector.extract_strided_slice %83 {offsets = [0, 0], sizes = [8, 32], strides = [1, 1]} : vector<8x128xf32> to vector<8x32xf32>
    %85 = arith.addf %81, %84 : vector<8x32xf32>
    %cst_37 = arith.constant 2.000000e-01 : f32
    %86 = vector.broadcast %cst_37 : f32 to vector<8x32xf32>
    %87 = arith.mulf %86, %85 : vector<8x32xf32>
    %88 = arith.maximumf %85, %87 : vector<8x32xf32>
    tpu.wait_dma2 semaphore(%arg10 : memref<!tpu.dma_semaphore, #tpu.memory_space<semaphore_mem>>) src(%arg0 : memref<784x64xbf16, #tpu.memory_space<any>>) dst(%arg9 : memref<784x64xbf16, #tpu.memory_space<vmem>>)
    %c3 = arith.constant 3 : index
    %c0_38 = arith.constant 0 : index
    %c0_39 = arith.constant 0 : index
    %89 = vector.load %arg7[%c3, %c0_38, %c0_39] : memref<19x8x128xf32, #tpu.memory_space<vmem>>, vector<1x8x128xf32>
    %90 = vector.shape_cast %89 : vector<1x8x128xf32> to vector<8x128xf32>
    %91 = vector.extract_strided_slice %90 {offsets = [0, 0], sizes = [8, 64], strides = [1, 1]} : vector<8x128xf32> to vector<8x64xf32>
    %c0_40 = arith.constant 0 : index
    %c0_41 = arith.constant 0 : index
    %92 = vector.load %arg1[%c0_40, %c0_41] : memref<8x784xbf16, #tpu.memory_space<vmem>>, vector<8x784xbf16>
    %c0_42 = arith.constant 0 : index
    %c0_43 = arith.constant 0 : index
    %93 = vector.load %arg9[%c0_42, %c0_43] : memref<784x64xbf16, #tpu.memory_space<vmem>>, vector<784x64xbf16>
    %cst_44 = arith.constant dense<0.000000e+00> : vector<8x64xf32>
    %94 = tpu.matmul %92, %93, %cst_44 {dimension_numbers = #tpu.dot_dimension_numbers<[1], [0], [0], [1], [0, 0, 1, 1], [], []>} : vector<8x784xbf16>, vector<784x64xbf16>, vector<8x64xf32> -> vector<8x64xf32>
    %c0_45 = arith.constant 0 : index
    %c0_46 = arith.constant 0 : index
    %c0_47 = arith.constant 0 : index
    %95 = vector.load %arg7[%c0_45, %c0_46, %c0_47] : memref<19x8x128xf32, #tpu.memory_space<vmem>>, vector<1x8x128xf32>
    %96 = vector.shape_cast %95 : vector<1x8x128xf32> to vector<8x128xf32>
    %97 = vector.extract_strided_slice %96 {offsets = [0, 0], sizes = [8, 64], strides = [1, 1]} : vector<8x128xf32> to vector<8x64xf32>
    %98 = arith.addf %94, %97 : vector<8x64xf32>
    %cst_48 = arith.constant dense<0.000000e+00> : vector<64xf32>
    %99 = vector.multi_reduction <add>, %98, %cst_48 [0] : vector<8x64xf32> to vector<64xf32>
    %100 = vector.shape_cast %99 : vector<64xf32> to vector<1x64xf32>
    %cst_49 = arith.constant 8.000000e+00 : f32
    %101 = vector.broadcast %cst_49 : f32 to vector<1x64xf32>
    %102 = arith.divf %100, %101 : vector<1x64xf32>
    %103 = arith.mulf %98, %98 : vector<8x64xf32>
    %cst_50 = arith.constant dense<0.000000e+00> : vector<64xf32>
    %104 = vector.multi_reduction <add>, %103, %cst_50 [0] : vector<8x64xf32> to vector<64xf32>
    %105 = vector.shape_cast %104 : vector<64xf32> to vector<1x64xf32>
    %cst_51 = arith.constant 8.000000e+00 : f32
    %106 = vector.broadcast %cst_51 : f32 to vector<1x64xf32>
    %107 = arith.divf %105, %106 : vector<1x64xf32>
    %108 = arith.mulf %102, %102 : vector<1x64xf32>
    %109 = arith.subf %107, %108 : vector<1x64xf32>
    %cst_52 = arith.constant 0.000000e+00 : f32
    %110 = vector.broadcast %cst_52 : f32 to vector<1x64xf32>
    %111 = arith.maximumf %109, %110 : vector<1x64xf32>
    %112 = vector.broadcast %102 : vector<1x64xf32> to vector<8x64xf32>
    %113 = arith.subf %98, %112 : vector<8x64xf32>
    %cst_53 = arith.constant 9.99999974E-6 : f32
    %114 = vector.broadcast %cst_53 : f32 to vector<1x64xf32>
    %115 = arith.addf %111, %114 : vector<1x64xf32>
    %116 = math.rsqrt %115 : vector<1x64xf32>
    %117 = vector.broadcast %116 : vector<1x64xf32> to vector<8x64xf32>
    %118 = arith.mulf %113, %117 : vector<8x64xf32>
    %c1 = arith.constant 1 : index
    %c0_54 = arith.constant 0 : index
    %c0_55 = arith.constant 0 : index
    %119 = vector.load %arg7[%c1, %c0_54, %c0_55] : memref<19x8x128xf32, #tpu.memory_space<vmem>>, vector<1x8x128xf32>
    %120 = vector.shape_cast %119 : vector<1x8x128xf32> to vector<8x128xf32>
    %121 = vector.extract_strided_slice %120 {offsets = [0, 0], sizes = [8, 64], strides = [1, 1]} : vector<8x128xf32> to vector<8x64xf32>
    %122 = arith.mulf %118, %121 : vector<8x64xf32>
    %c2 = arith.constant 2 : index
    %c0_56 = arith.constant 0 : index
    %c0_57 = arith.constant 0 : index
    %123 = vector.load %arg7[%c2, %c0_56, %c0_57] : memref<19x8x128xf32, #tpu.memory_space<vmem>>, vector<1x8x128xf32>
    %124 = vector.shape_cast %123 : vector<1x8x128xf32> to vector<8x128xf32>
    %125 = vector.extract_strided_slice %124 {offsets = [0, 0], sizes = [8, 64], strides = [1, 1]} : vector<8x128xf32> to vector<8x64xf32>
    %126 = arith.addf %122, %125 : vector<8x64xf32>
    %127 = arith.mulf %91, %126 : vector<8x64xf32>
    %128 = arith.maximumf %126, %127 : vector<8x64xf32>
    %c0_58 = arith.constant 0 : index
    %c0_59 = arith.constant 0 : index
    %129 = vector.load %arg5[%c0_58, %c0_59] : memref<64x64xf32, #tpu.memory_space<vmem>>, vector<64x64xf32>
    %cst_60 = arith.constant dense<0.000000e+00> : vector<8x64xf32>
    %130 = tpu.matmul %128, %129, %cst_60 {dimension_numbers = #tpu.dot_dimension_numbers<[1], [0], [0], [1], [0, 0, 1, 1], [], []>} : vector<8x64xf32>, vector<64x64xf32>, vector<8x64xf32> -> vector<8x64xf32>
    %c4 = arith.constant 4 : index
    %c0_61 = arith.constant 0 : index
    %c0_62 = arith.constant 0 : index
    %131 = vector.load %arg7[%c4, %c0_61, %c0_62] : memref<19x8x128xf32, #tpu.memory_space<vmem>>, vector<1x8x128xf32>
    %132 = vector.shape_cast %131 : vector<1x8x128xf32> to vector<8x128xf32>
    %133 = vector.extract_strided_slice %132 {offsets = [0, 0], sizes = [8, 64], strides = [1, 1]} : vector<8x128xf32> to vector<8x64xf32>
    %134 = arith.addf %130, %133 : vector<8x64xf32>
    %cst_63 = arith.constant dense<0.000000e+00> : vector<64xf32>
    %135 = vector.multi_reduction <add>, %134, %cst_63 [0] : vector<8x64xf32> to vector<64xf32>
    %136 = vector.shape_cast %135 : vector<64xf32> to vector<1x64xf32>
    %cst_64 = arith.constant 8.000000e+00 : f32
    %137 = vector.broadcast %cst_64 : f32 to vector<1x64xf32>
    %138 = arith.divf %136, %137 : vector<1x64xf32>
    %139 = arith.mulf %134, %134 : vector<8x64xf32>
    %cst_65 = arith.constant dense<0.000000e+00> : vector<64xf32>
    %140 = vector.multi_reduction <add>, %139, %cst_65 [0] : vector<8x64xf32> to vector<64xf32>
    %141 = vector.shape_cast %140 : vector<64xf32> to vector<1x64xf32>
    %cst_66 = arith.constant 8.000000e+00 : f32
    %142 = vector.broadcast %cst_66 : f32 to vector<1x64xf32>
    %143 = arith.divf %141, %142 : vector<1x64xf32>
    %144 = arith.mulf %138, %138 : vector<1x64xf32>
    %145 = arith.subf %143, %144 : vector<1x64xf32>
    %cst_67 = arith.constant 0.000000e+00 : f32
    %146 = vector.broadcast %cst_67 : f32 to vector<1x64xf32>
    %147 = arith.maximumf %145, %146 : vector<1x64xf32>
    %148 = vector.broadcast %138 : vector<1x64xf32> to vector<8x64xf32>
    %149 = arith.subf %134, %148 : vector<8x64xf32>
    %cst_68 = arith.constant 9.99999974E-6 : f32
    %150 = vector.broadcast %cst_68 : f32 to vector<1x64xf32>
    %151 = arith.addf %147, %150 : vector<1x64xf32>
    %152 = math.rsqrt %151 : vector<1x64xf32>
    %153 = vector.broadcast %152 : vector<1x64xf32> to vector<8x64xf32>
    %154 = arith.mulf %149, %153 : vector<8x64xf32>
    %c5 = arith.constant 5 : index
    %c0_69 = arith.constant 0 : index
    %c0_70 = arith.constant 0 : index
    %155 = vector.load %arg7[%c5, %c0_69, %c0_70] : memref<19x8x128xf32, #tpu.memory_space<vmem>>, vector<1x8x128xf32>
    %156 = vector.shape_cast %155 : vector<1x8x128xf32> to vector<8x128xf32>
    %157 = vector.extract_strided_slice %156 {offsets = [0, 0], sizes = [8, 64], strides = [1, 1]} : vector<8x128xf32> to vector<8x64xf32>
    %158 = arith.mulf %154, %157 : vector<8x64xf32>
    %c6 = arith.constant 6 : index
    %c0_71 = arith.constant 0 : index
    %c0_72 = arith.constant 0 : index
    %159 = vector.load %arg7[%c6, %c0_71, %c0_72] : memref<19x8x128xf32, #tpu.memory_space<vmem>>, vector<1x8x128xf32>
    %160 = vector.shape_cast %159 : vector<1x8x128xf32> to vector<8x128xf32>
    %161 = vector.extract_strided_slice %160 {offsets = [0, 0], sizes = [8, 64], strides = [1, 1]} : vector<8x128xf32> to vector<8x64xf32>
    %162 = arith.addf %158, %161 : vector<8x64xf32>
    %163 = arith.mulf %91, %162 : vector<8x64xf32>
    %164 = arith.maximumf %162, %163 : vector<8x64xf32>
    %c7 = arith.constant 7 : index
    %c0_73 = arith.constant 0 : index
    %c0_74 = arith.constant 0 : index
    %165 = vector.load %arg7[%c7, %c0_73, %c0_74] : memref<19x8x128xf32, #tpu.memory_space<vmem>>, vector<1x8x128xf32>
    %166 = vector.shape_cast %165 : vector<1x8x128xf32> to vector<8x128xf32>
    %167 = vector.extract_strided_slice %166 {offsets = [0, 0], sizes = [8, 64], strides = [1, 1]} : vector<8x128xf32> to vector<8x64xf32>
    %168 = arith.mulf %164, %167 : vector<8x64xf32>
    %cst_75 = arith.constant dense<0.000000e+00> : vector<8xf32>
    %169 = vector.multi_reduction <add>, %168, %cst_75 [1] : vector<8x64xf32> to vector<8xf32>
    %170 = vector.shape_cast %169 : vector<8xf32> to vector<8x1xf32>
    %171 = vector.extract_strided_slice %6 {offsets = [0, 0], sizes = [8, 1], strides = [1, 1]} : vector<8x2xf32> to vector<8x1xf32>
    %172 = arith.addf %170, %171 : vector<8x1xf32>
    %173 = tpu.concatenate %164, %88 in 1 : vector<8x64xf32>, vector<8x32xf32> -> vector<8x96xf32>
    %c0_76 = arith.constant 0 : index
    %c0_77 = arith.constant 0 : index
    %174 = vector.load %arg6[%c0_76, %c0_77] : memref<96x64xf32, #tpu.memory_space<vmem>>, vector<96x64xf32>
    %cst_78 = arith.constant dense<0.000000e+00> : vector<8x64xf32>
    %175 = tpu.matmul %173, %174, %cst_78 {dimension_numbers = #tpu.dot_dimension_numbers<[1], [0], [0], [1], [0, 0, 1, 1], [], []>} : vector<8x96xf32>, vector<96x64xf32>, vector<8x64xf32> -> vector<8x64xf32>
    %c16 = arith.constant 16 : index
    %c0_79 = arith.constant 0 : index
    %c0_80 = arith.constant 0 : index
    %176 = vector.load %arg7[%c16, %c0_79, %c0_80] : memref<19x8x128xf32, #tpu.memory_space<vmem>>, vector<1x8x128xf32>
    %177 = vector.shape_cast %176 : vector<1x8x128xf32> to vector<8x128xf32>
    %178 = vector.extract_strided_slice %177 {offsets = [0, 0], sizes = [8, 64], strides = [1, 1]} : vector<8x128xf32> to vector<8x64xf32>
    %179 = arith.addf %175, %178 : vector<8x64xf32>
    %cst_81 = arith.constant dense<0.000000e+00> : vector<64xf32>
    %180 = vector.multi_reduction <add>, %179, %cst_81 [0] : vector<8x64xf32> to vector<64xf32>
    %181 = vector.shape_cast %180 : vector<64xf32> to vector<1x64xf32>
    %cst_82 = arith.constant 8.000000e+00 : f32
    %182 = vector.broadcast %cst_82 : f32 to vector<1x64xf32>
    %183 = arith.divf %181, %182 : vector<1x64xf32>
    %184 = arith.mulf %179, %179 : vector<8x64xf32>
    %cst_83 = arith.constant dense<0.000000e+00> : vector<64xf32>
    %185 = vector.multi_reduction <add>, %184, %cst_83 [0] : vector<8x64xf32> to vector<64xf32>
    %186 = vector.shape_cast %185 : vector<64xf32> to vector<1x64xf32>
    %cst_84 = arith.constant 8.000000e+00 : f32
    %187 = vector.broadcast %cst_84 : f32 to vector<1x64xf32>
    %188 = arith.divf %186, %187 : vector<1x64xf32>
    %189 = arith.mulf %183, %183 : vector<1x64xf32>
    %190 = arith.subf %188, %189 : vector<1x64xf32>
    %cst_85 = arith.constant 0.000000e+00 : f32
    %191 = vector.broadcast %cst_85 : f32 to vector<1x64xf32>
    %192 = arith.maximumf %190, %191 : vector<1x64xf32>
    %193 = vector.broadcast %183 : vector<1x64xf32> to vector<8x64xf32>
    %194 = arith.subf %179, %193 : vector<8x64xf32>
    %cst_86 = arith.constant 9.99999974E-6 : f32
    %195 = vector.broadcast %cst_86 : f32 to vector<1x64xf32>
    %196 = arith.addf %192, %195 : vector<1x64xf32>
    %197 = math.rsqrt %196 : vector<1x64xf32>
    %198 = vector.broadcast %197 : vector<1x64xf32> to vector<8x64xf32>
    %199 = arith.mulf %194, %198 : vector<8x64xf32>
    %c17 = arith.constant 17 : index
    %c0_87 = arith.constant 0 : index
    %c0_88 = arith.constant 0 : index
    %200 = vector.load %arg7[%c17, %c0_87, %c0_88] : memref<19x8x128xf32, #tpu.memory_space<vmem>>, vector<1x8x128xf32>
    %201 = vector.shape_cast %200 : vector<1x8x128xf32> to vector<8x128xf32>
    %202 = vector.extract_strided_slice %201 {offsets = [0, 0], sizes = [8, 64], strides = [1, 1]} : vector<8x128xf32> to vector<8x64xf32>
    %203 = arith.mulf %199, %202 : vector<8x64xf32>
    %c18 = arith.constant 18 : index
    %c0_89 = arith.constant 0 : index
    %c0_90 = arith.constant 0 : index
    %204 = vector.load %arg7[%c18, %c0_89, %c0_90] : memref<19x8x128xf32, #tpu.memory_space<vmem>>, vector<1x8x128xf32>
    %205 = vector.shape_cast %204 : vector<1x8x128xf32> to vector<8x128xf32>
    %206 = vector.extract_strided_slice %205 {offsets = [0, 0], sizes = [8, 64], strides = [1, 1]} : vector<8x128xf32> to vector<8x64xf32>
    %207 = arith.addf %203, %206 : vector<8x64xf32>
    %cst_91 = arith.constant 2.000000e-01 : f32
    %208 = vector.broadcast %cst_91 : f32 to vector<8x64xf32>
    %209 = arith.mulf %208, %207 : vector<8x64xf32>
    %210 = arith.maximumf %207, %209 : vector<8x64xf32>
    %211 = vector.extract_strided_slice %210 {offsets = [0, 0], sizes = [8, 32], strides = [1, 1]} : vector<8x64xf32> to vector<8x32xf32>
    %212 = vector.extract_strided_slice %210 {offsets = [0, 32], sizes = [8, 32], strides = [1, 1]} : vector<8x64xf32> to vector<8x32xf32>
    %213 = arith.mulf %211, %212 : vector<8x32xf32>
    %cst_92 = arith.constant dense<0.000000e+00> : vector<8xf32>
    %214 = vector.multi_reduction <add>, %213, %cst_92 [1] : vector<8x32xf32> to vector<8xf32>
    %215 = vector.shape_cast %214 : vector<8xf32> to vector<8x1xf32>
    %216 = arith.addf %215, %172 : vector<8x1xf32>
    %217 = arith.addf %216, %51 : vector<8x1xf32>
    %cst_93 = arith.constant 5.000000e-01 : f32
    %218 = vector.broadcast %cst_93 : f32 to vector<8x1xf32>
    %219 = arith.mulf %218, %3 : vector<8x1xf32>
    %220 = arith.subf %217, %219 : vector<8x1xf32>
    %221 = arith.negf %220 : vector<8x1xf32>
    %222 = math.exp %221 : vector<8x1xf32>
    %cst_94 = arith.constant 1.000000e+00 : f32
    %223 = vector.broadcast %cst_94 : f32 to vector<8x1xf32>
    %224 = arith.addf %223, %222 : vector<8x1xf32>
    %225 = arith.divf %223, %224 : vector<8x1xf32>
    %226 = tpu.iota {dimensions = array<i32: 0>} : vector<8x8xi32>
    %227 = tpu.iota {dimensions = array<i32: 1>} : vector<8x8xi32>
    %228 = arith.cmpi eq, %226, %227 : vector<8x8xi32>
    %229 = arith.extui %228 : vector<8x8xi1> to vector<8x8xi32>
    %230 = arith.sitofp %229 : vector<8x8xi32> to vector<8x8xf32>
    %231 = vector.broadcast %225 : vector<8x1xf32> to vector<8x8xf32>
    %232 = arith.mulf %231, %230 : vector<8x8xf32>
    %cst_95 = arith.constant dense<0.000000e+00> : vector<8xf32>
    %233 = vector.multi_reduction <add>, %232, %cst_95 [0] : vector<8x8xf32> to vector<8xf32>
    %234 = vector.shape_cast %233 : vector<8xf32> to vector<1x8xf32>
    %c0_96 = arith.constant 0 : index
    %c0_97 = arith.constant 0 : index
    %235 = vector.load %arg8[%c0_96, %c0_97] : memref<1x8xf32, #tpu.memory_space<vmem>>, vector<1x8xf32>
    tpu.vector_store %arg8[%c0_96, %c0_97], %234 {strides = array<i32>} : memref<1x8xf32, #tpu.memory_space<vmem>>, vector<1x8xf32>,
    return
  }
}

</mosaic_0001>

<llo_original>
// kernel: tpu_custom_call.1
$region0: #{tpu_custom_call.1}
  #allocation0 [shape = 'u32[]', space=smem, size = 0x4, offset = 0x4, fixed_abs, tag = 'smem constant byte address 0x4 - core index']
  #allocation1 [shape = 'u32[144,128]{1,0:T(1,128)}', space=vmem, size = 0x12000, scoped, tag = 'internal scratch']
  #allocation2 [shape = 'bf16[784,64]{1,0:T(16,128)(2,1)}', space=vmem, size = 0x31000, scoped, tag = 'scratch operand']
  #allocation3 [shape = 's32[1]{0}', space=sflag, size = 0x4, scoped, tag = 'scratch operand']
  #allocation6 [shape = 's32[]', space=sflag, size = 0x4, offset = 0, fixed_abs, tag = 'sflag constant byte address 0x0 - dummy sync flag']
  %s0 = inlined_call_operand.vmem [shape: bf16[784,64], index: 0, kind: input, shape index: {}]
  %s1 = inlined_call_operand.vmem [shape: bf16[8,784], index: 1, kind: input, shape index: {}]
  %s2 = inlined_call_operand.vmem [shape: f32[8,8], index: 2, kind: input, shape index: {}]
  %s3 = inlined_call_operand.vmem [shape: f32[8,16], index: 3, kind: input, shape index: {}]
  %s4 = inlined_call_operand.vmem [shape: f32[16,32], index: 4, kind: input, shape index: {}]
  %s5 = inlined_call_operand.vmem [shape: f32[64,64], index: 5, kind: input, shape index: {}]
  %s6 = inlined_call_operand.vmem [shape: f32[96,64], index: 6, kind: input, shape index: {}]
  %s7 = inlined_call_operand.vmem [shape: f32[19,8,128], index: 7, kind: input, shape index: {}]
  %s8 = inlined_call_operand.hbm [shape: f32[1,8], index: 8, kind: output, shape index: {}]
  %s9 = sld [smem:[#allocation0]]
  $region72: #{tpu_custom_call.1} parent=0
    _
  %s11 = ssub.s32 1, %s9
  %s12 = scalar_select 0, %s11, %s9
  $region1: #{tpu_custom_call.1} parent=0
    #allocation4 [shape = 'u8[512]{0}', space=vmem, size = 0x400, scoped, tag = 'output window, operand 0, single buffered']
    #allocation5 [shape = 's32[1]{0}', space=sflag, size = 0x4, scoped, tag = 'scoped memory for tpu_custom_call.1']
    %13 = vsyncpa [#allocation5], 0
    // Predicated region
    $region2: #{tpu_custom_call.1} parent=1 // pred_check
      _
    $region3: #{tpu_custom_call.1} parent=1 // pred_check_branch
      %15 = sbr.rel (0) target = $region5
    $region4: #{tpu_custom_call.1} parent=1 // pred_region
      _
    $region5: #{tpu_custom_call.1} parent=1 // pred_fallthru
      _
    // Predicated region
    $region6: #{tpu_custom_call.1} parent=1 // pred_check
      _
    $region7: #{tpu_custom_call.1} parent=1 // pred_check_branch
      %17 = sbr.rel (0) target = $region9
    $region8: #{tpu_custom_call.1} parent=1 // pred_region
      _
    $region9: #{tpu_custom_call.1} parent=1 // pred_fallthru
      _
    // Predicated region
    $region10: #{tpu_custom_call.1} parent=1 // pred_check
      _
    $region11: #{tpu_custom_call.1} parent=1 // pred_check_branch
      %19 = sbr.rel (0) target = $region13
    $region12: #{tpu_custom_call.1} parent=1 // pred_region
      _
    $region13: #{tpu_custom_call.1} parent=1 // pred_fallthru
      _
    // Predicated region
    $region14: #{tpu_custom_call.1} parent=1 // pred_check
      _
    $region15: #{tpu_custom_call.1} parent=1 // pred_check_branch
      %21 = sbr.rel (0) target = $region17
    $region16: #{tpu_custom_call.1} parent=1 // pred_region
      _
    $region17: #{tpu_custom_call.1} parent=1 // pred_fallthru
      _
    // Predicated region
    $region18: #{tpu_custom_call.1} parent=1 // pred_check
      _
    $region19: #{tpu_custom_call.1} parent=1 // pred_check_branch
      %23 = sbr.rel (0) target = $region21
    $region20: #{tpu_custom_call.1} parent=1 // pred_region
      _
    $region21: #{tpu_custom_call.1} parent=1 // pred_fallthru
      _
    // Predicated region
    $region22: #{tpu_custom_call.1} parent=1 // pred_check
      _
    $region23: #{tpu_custom_call.1} parent=1 // pred_check_branch
      %25 = sbr.rel (0) target = $region25
    $region24: #{tpu_custom_call.1} parent=1 // pred_region
      _
    $region25: #{tpu_custom_call.1} parent=1 // pred_fallthru
      _
    // Predicated region
    $region26: #{tpu_custom_call.1} parent=1 // pred_check
      _
    $region27: #{tpu_custom_call.1} parent=1 // pred_check_branch
      %27 = sbr.rel (0) target = $region29
    $region28: #{tpu_custom_call.1} parent=1 // pred_region
      _
    $region29: #{tpu_custom_call.1} parent=1 // pred_fallthru
      _
    %p30 = scmp.lt.u32.totalorder 392, 8
    %p31 = pneg %p30
    // Predicated region
    $region30: #{tpu_custom_call.1} parent=1 // pred_check
      _
    $region31: #{tpu_custom_call.1} parent=1 // pred_check_branch
      %33 = sbr.rel (%p30) target = $region33
    $region32: #{tpu_custom_call.1} parent=1 // pred_region
      %s48 = sand.u32 392, 7
      %p49 = scmp.eq.s32.totalorder %s48, 0
      // Predicated region
      $region45: #{tpu_custom_call.1} parent=32 // pred_check
        %p50 = pneg %p49
      $region46: #{tpu_custom_call.1} parent=32 // pred_check_branch
        %52 = sbr.rel (%p50) target = $region48
      $region47: #{tpu_custom_call.1} parent=32 // pred_region
        loop: start=0, step=1, limit=1
        $region49: #{tpu_custom_call.1} parent=47 // loop_pre_header
          _
        $region50: #{tpu_custom_call.1} parent=47 // loop_header
          %s54 = sphi 0, %s58
          %p55 = scmp.ge.s32.totalorder %s54, 1
          %s59 = sphi %s0, %s0
          %s60 = sphi [#allocation2], [#allocation2]
        $region51: #{tpu_custom_call.1} parent=47 // loop_header_branch
          %57 = sbr.rel (%p55) target = $region55
        $region52: #{tpu_custom_call.1} parent=47 // loop_body
          %v61 = vld [vmem:[%s59] sm:$0xff]
          %62 = vst [vmem:[%s60] sm:$0xff] %v61
          %v63 = vld [vmem:[%s59 + $0x8] sm:$0xff]
          %64 = vst [vmem:[%s60 + $0x8] sm:$0xff] %v63
          %v65 = vld [vmem:[%s59 + $0x10] sm:$0xff]
          %66 = vst [vmem:[%s60 + $0x10] sm:$0xff] %v65
          %v67 = vld [vmem:[%s59 + $0x18] sm:$0xff]
          %68 = vst [vmem:[%s60 + $0x18] sm:$0xff] %v67
          %v69 = vld [vmem:[%s59 + $0x20] sm:$0xff]
          %70 = vst [vmem:[%s60 + $0x20] sm:$0xff] %v69
          %v71 = vld [vmem:[%s59 + $0x28] sm:$0xff]
          %72 = vst [vmem:[%s60 + $0x28] sm:$0xff] %v71
          %v73 = vld [vmem:[%s59 + $0x30] sm:$0xff]
          %74 = vst [vmem:[%s60 + $0x30] sm:$0xff] %v73
          %v75 = vld [vmem:[%s59 + $0x38] sm:$0xff]
          %76 = vst [vmem:[%s60 + $0x38] sm:$0xff] %v75
          %v77 = vld [vmem:[%s59 + $0x40] sm:$0xff]
          %78 = vst [vmem:[%s60 + $0x40] sm:$0xff] %v77
          %v79 = vld [vmem:[%s59 + $0x48] sm:$0xff]
          %80 = vst [vmem:[%s60 + $0x48] sm:$0xff] %v79
          %v81 = vld [vmem:[%s59 + $0x50] sm:$0xff]
          %82 = vst [vmem:[%s60 + $0x50] sm:$0xff] %v81
          %v83 = vld [vmem:[%s59 + $0x58] sm:$0xff]
          %84 = vst [vmem:[%s60 + $0x58] sm:$0xff] %v83
          %v85 = vld [vmem:[%s59 + $0x60] sm:$0xff]
          %86 = vst [vmem:[%s60 + $0x60] sm:$0xff] %v85
          %v87 = vld [vmem:[%s59 + $0x68] sm:$0xff]
          %88 = vst [vmem:[%s60 + $0x68] sm:$0xff] %v87
          %v89 = vld [vmem:[%s59 + $0x70] sm:$0xff]
          %90 = vst [vmem:[%s60 + $0x70] sm:$0xff] %v89
          %v91 = vld [vmem:[%s59 + $0x78] sm:$0xff]
          %92 = vst [vmem:[%s60 + $0x78] sm:$0xff] %v91
          %v93 = vld [vmem:[%s59 + $0x80] sm:$0xff]
          %94 = vst [vmem:[%s60 + $0x80] sm:$0xff] %v93
          %v95 = vld [vmem:[%s59 + $0x88] sm:$0xff]
          %96 = vst [vmem:[%s60 + $0x88] sm:$0xff] %v95
          %v97 = vld [vmem:[%s59 + $0x90] sm:$0xff]
          %98 = vst [vmem:[%s60 + $0x90] sm:$0xff] %v97
          %v99 = vld [vmem:[%s59 + $0x98] sm:$0xff]
          %100 = vst [vmem:[%s60 + $0x98] sm:$0xff] %v99
          %v101 = vld [vmem:[%s59 + $0xa0] sm:$0xff]
          %102 = vst [vmem:[%s60 + $0xa0] sm:$0xff] %v101
          %v103 = vld [vmem:[%s59 + $0xa8] sm:$0xff]
          %104 = vst [vmem:[%s60 + $0xa8] sm:$0xff] %v103
          %v105 = vld [vmem:[%s59 + $0xb0] sm:$0xff]
          %106 = vst [vmem:[%s60 + $0xb0] sm:$0xff] %v105
          %v107 = vld [vmem:[%s59 + $0xb8] sm:$0xff]
          %108 = vst [vmem:[%s60 + $0xb8] sm:$0xff] %v107
          %v109 = vld [vmem:[%s59 + $0xc0] sm:$0xff]
          %110 = vst [vmem:[%s60 + $0xc0] sm:$0xff] %v109
          %v111 = vld [vmem:[%s59 + $0xc8] sm:$0xff]
          %112 = vst [vmem:[%s60 + $0xc8] sm:$0xff] %v111
          %v113 = vld [vmem:[%s59 + $0xd0] sm:$0xff]
          %114 = vst [vmem:[%s60 + $0xd0] sm:$0xff] %v113
          %v115 = vld [vmem:[%s59 + $0xd8] sm:$0xff]
          %116 = vst [vmem:[%s60 + $0xd8] sm:$0xff] %v115
          %v117 = vld [vmem:[%s59 + $0xe0] sm:$0xff]
          %118 = vst [vmem:[%s60 + $0xe0] sm:$0xff] %v117
          %v119 = vld [vmem:[%s59 + $0xe8] sm:$0xff]
          %120 = vst [vmem:[%s60 + $0xe8] sm:$0xff] %v119
          %v121 = vld [vmem:[%s59 + $0xf0] sm:$0xff]
          %122 = vst [vmem:[%s60 + $0xf0] sm:$0xff] %v121
          %v123 = vld [vmem:[%s59 + $0xf8] sm:$0xff]
          %124 = vst [vmem:[%s60 + $0xf8] sm:$0xff] %v123
          %v125 = vld [vmem:[%s59 + $0x100] sm:$0xff]
          %126 = vst [vmem:[%s60 + $0x100] sm:$0xff] %v125
          %v127 = vld [vmem:[%s59 + $0x108] sm:$0xff]
          %128 = vst [vmem:[%s60 + $0x108] sm:$0xff] %v127
          %v129 = vld [vmem:[%s59 + $0x110] sm:$0xff]
          %130 = vst [vmem:[%s60 + $0x110] sm:$0xff] %v129
          %v131 = vld [vmem:[%s59 + $0x118] sm:$0xff]
          %132 = vst [vmem:[%s60 + $0x118] sm:$0xff] %v131
          %v133 = vld [vmem:[%s59 + $0x120] sm:$0xff]
          %134 = vst [vmem:[%s60 + $0x120] sm:$0xff] %v133
          %v135 = vld [vmem:[%s59 + $0x128] sm:$0xff]
          %136 = vst [vmem:[%s60 + $0x128] sm:$0xff] %v135
          %v137 = vld [vmem:[%s59 + $0x130] sm:$0xff]
          %138 = vst [vmem:[%s60 + $0x130] sm:$0xff] %v137
          %v139 = vld [vmem:[%s59 + $0x138] sm:$0xff]
          %140 = vst [vmem:[%s60 + $0x138] sm:$0xff] %v139
          %v141 = vld [vmem:[%s59 + $0x140] sm:$0xff]
          %142 = vst [vmem:[%s60 + $0x140] sm:$0xff] %v141
          %v143 = vld [vmem:[%s59 + $0x148] sm:$0xff]
          %144 = vst [vmem:[%s60 + $0x148] sm:$0xff] %v143
          %v145 = vld [vmem:[%s59 + $0x150] sm:$0xff]
          %146 = vst [vmem:[%s60 + $0x150] sm:$0xff] %v145
          %v147 = vld [vmem:[%s59 + $0x158] sm:$0xff]
          %148 = vst [vmem:[%s60 + $0x158] sm:$0xff] %v147
          %v149 = vld [vmem:[%s59 + $0x160] sm:$0xff]
          %150 = vst [vmem:[%s60 + $0x160] sm:$0xff] %v149
          %v151 = vld [vmem:[%s59 + $0x168] sm:$0xff]
          %152 = vst [vmem:[%s60 + $0x168] sm:$0xff] %v151
          %v153 = vld [vmem:[%s59 + $0x170] sm:$0xff]
          %154 = vst [vmem:[%s60 + $0x170] sm:$0xff] %v153
          %v155 = vld [vmem:[%s59 + $0x178] sm:$0xff]
          %156 = vst [vmem:[%s60 + $0x178] sm:$0xff] %v155
          %v157 = vld [vmem:[%s59 + $0x180] sm:$0xff]
          %158 = vst [vmem:[%s60 + $0x180] sm:$0xff] %v157
        $region53: #{tpu_custom_call.1} parent=47 // loop_footer
          %s58 = sadd.s32 1, %s54
        $region54: #{tpu_custom_call.1} parent=47 // loop_footer_branch
          %53 = sbr.rel target = $region50
        $region55: #{tpu_custom_call.1} parent=47 // loop_exit
          _
      $region48: #{tpu_custom_call.1} parent=32 // pred_fallthru
        _
      %p159 = pneg %p49
      // Predicated region
      $region56: #{tpu_custom_call.1} parent=32 // pred_check
        _
      $region57: #{tpu_custom_call.1} parent=32 // pred_check_branch
        %161 = sbr.rel (%p49) target = $region59
      $region58: #{tpu_custom_call.1} parent=32 // pred_region
        %s162 = sand.u32 392, 7
      $region59: #{tpu_custom_call.1} parent=32 // pred_fallthru
        _
    $region33: #{tpu_custom_call.1} parent=1 // pred_fallthru
      _
    // Predicated region
    $region34: #{tpu_custom_call.1} parent=1 // pred_check
      %p34 = pneg %p30
    $region35: #{tpu_custom_call.1} parent=1 // pred_check_branch
      %36 = sbr.rel (%p34) target = $region37
    $region36: #{tpu_custom_call.1} parent=1 // pred_region
      %s37 = sshllo.u32 0, 392
      loop: start=0, step=1, limit=1
      $region38: #{tpu_custom_call.1} parent=36 // loop_pre_header
        _
      $region39: #{tpu_custom_call.1} parent=36 // loop_header
        %s39 = sphi 0, %s43
        %p40 = scmp.ge.s32.totalorder %s39, 1
        %s44 = sphi %s0, %s0
        %s45 = sphi [#allocation2], [#allocation2]
      $region40: #{tpu_custom_call.1} parent=36 // loop_header_branch
        %42 = sbr.rel (%p40) target = $region44
      $region41: #{tpu_custom_call.1} parent=36 // loop_body
        %v46 = vld [vmem:[%s44] sm:%s37]
        %47 = vst [vmem:[%s45] sm:%s37] %v46
      $region42: #{tpu_custom_call.1} parent=36 // loop_footer
        %s43 = sadd.s32 1, %s39
      $region43: #{tpu_custom_call.1} parent=36 // loop_footer_branch
        %38 = sbr.rel target = $region39
      $region44: #{tpu_custom_call.1} parent=36 // loop_exit
        _
    $region37: #{tpu_custom_call.1} parent=1 // pred_fallthru
      _
    // Predicated region
    $region60: #{tpu_custom_call.1} parent=1 // pred_check
      _
    $region61: #{tpu_custom_call.1} parent=1 // pred_check_branch
      %165 = sbr.rel (0) target = $region63
    $region62: #{tpu_custom_call.1} parent=1 // pred_region
      %166 = vsyncadd [#allocation3], 6272
    $region63: #{tpu_custom_call.1} parent=1 // pred_fallthru
      _
    %v167 = vld [vmem:[%s2] sm:$0xff]
    %v168 = vmul.f32 %v167, %v167
    %vm169 = vcmask 64512
    %v170 = vsel %vm169, %v168, 0.0
    %171 = vadd.xlane.f32.xlu0 %v170
    %v172 = vpop.xlane.xlu0 %171
    %s173 = scalar_lea.vmem %s7, 64
    %v174 = vld [vmem:[%s173] sm:$0xff]
    %v175 = vld [vmem:[%s3] sm:$0xff]
    %s176 = scalar_lea.vmem %s7, 72
    %v177 = vld [vmem:[%s176] sm:$0xff]
    %v179 = vsel %vm169, %v167, 0
    %181 = vmatprep.subr.mxu0 0.0
    %182 = vmatpush1.msra.mxu0 %v175
    %183 = vmatprep.subr.mxu0 0.0
    %184 = vmatpush1.msra.mxu0 0.0
    %185 = vmatprep.subr.mxu0 0.0
    %186 = vmatpush1.msra.mxu0 0.0
    %187 = vmatprep.subr.mxu0 0.0
    %188 = vmatpush1.msra.mxu0 0.0
    %189 = vmatprep.subr.mxu0 0.0
    %190 = vmatpush1.msra.mxu0 0.0
    %191 = vmatprep.subr.mxu0 0.0
    %192 = vmatpush1.msra.mxu0 0.0
    %193 = vmatprep.subr.mxu0 0.0
    %194 = vmatpush1.msra.mxu0 0.0
    %195 = vmatprep.subr.mxu0 0.0
    %196 = vmatpush1.msra.mxu0 0.0
    %197 = vmatprep.subr.mxu0 0.0
    %198 = vmatpush1.msra.mxu0 0.0
    %199 = vmatprep.subr.mxu0 0.0
    %200 = vmatpush1.msra.mxu0 0.0
    %201 = vmatprep.subr.mxu0 0.0
    %202 = vmatpush1.msra.mxu0 0.0
    %203 = vmatprep.subr.mxu0 0.0
    %204 = vmatpush1.msra.mxu0 0.0
    %205 = vmatprep.subr.mxu0 0.0
    %206 = vmatpush1.msra.mxu0 0.0
    %207 = vmatprep.subr.mxu0 0.0
    %208 = vmatpush1.msra.mxu0 0.0
    %209 = vmatprep.subr.mxu0 0.0
    %210 = vmatpush1.msra.mxu0 0.0
    %211 = vmatprep.subr.mxu0 0.0
    %212 = vmatpush1.msra.mxu0 0.0
    %213 = vmatprep.subr.mxu0 0.0
    %214 = vmatpush1.msra.mxu0 0.0
    %215 = vmatprep.subr.mxu0 0.0
    %216 = vmatpush1.msra.mxu0 0.0
    %217 = vmatprep.subr.mxu0 0.0
    %218 = vmatpush1.msra.mxu0 0.0
    %219 = vmatprep.subr.mxu0 0.0
    %220 = vmatpush1.msra.mxu0 0.0
    %221 = vmatprep.subr.mxu0 0.0
    %222 = vmatpush1.msra.mxu0 0.0
    %223 = vmatprep.subr.mxu0 0.0
    %224 = vmatpush1.msra.mxu0 0.0
    %225 = vmatprep.subr.mxu0 0.0
    %226 = vmatpush1.msra.mxu0 0.0
    %227 = vmatprep.subr.mxu0 0.0
    %228 = vmatpush1.msra.mxu0 0.0
    %229 = vmatprep.subr.mxu0 0.0
    %230 = vmatpush1.msra.mxu0 0.0
    %231 = vmatprep.subr.mxu0 0.0
    %232 = vmatpush1.msra.mxu0 0.0
    %233 = vmatprep.subr.mxu0 0.0
    %234 = vmatpush1.msra.mxu0 0.0
    %235 = vmatprep.subr.mxu0 0.0
    %236 = vmatpush1.msra.mxu0 0.0
    %237 = vmatprep.subr.mxu0 0.0
    %238 = vmatpush1.msra.mxu0 0.0
    %239 = vmatprep.subr.mxu0 0.0
    %240 = vmatpush1.msra.mxu0 0.0
    %241 = vmatprep.subr.mxu0 0.0
    %242 = vmatpush1.msra.mxu0 0.0
    %243 = vmatprep.subr.mxu0 0.0
    %244 = vmatpush1.msra.mxu0 0.0
    %245 = vmatprep.mubr.f32.mxu0 0.0
    %246 = vmatmul.mubr.f32.gmra.mrb[0].mxu0 %v179
    %v247 = vpop.f32.mrb[0].mxu0
    %v248 = vadd.f32 %v177, %v247
    %v249 = vpop.f32.mrb[0].mxu0
    %250 = vdwg.mxu0
    %vm251 = vcmask 130048
    %v252 = vsel %vm251, %v248, 0.0
    %v253 = vrot.slane %v252, 4
    %v254 = vadd.f32 %v252, %v253
    %v255 = vrot.slane %v254, 2
    %v256 = vadd.f32 %v254, %v255
    %v257 = vrot.slane %v256, 1
    %v258 = vadd.f32 %v256, %v257
    %v259 = vrcp.pop 8.0
    %v260 = vmul.f32 %v258, %v259
    %v261 = vmul.f32 %v248, %v248
    %v262 = vsel %vm251, %v261, 0.0
    %v263 = vrot.slane %v262, 4
    %v264 = vadd.f32 %v262, %v263
    %v265 = vrot.slane %v264, 2
    %v266 = vadd.f32 %v264, %v265
    %v267 = vrot.slane %v266, 1
    %v268 = vadd.f32 %v266, %v267
    %v269 = vmul.f32 %v268, %v259
    %v270 = vmul.f32 %v260, %v260
    %v271 = vsub.f32 %v269, %v270
    %v272 = vmax.f32 %v271, 0.0
    %v273 = vsub.f32 %v248, %v260
    %v274 = vadd.f32 %v272, 1e-05
    %v275 = vrsqrt.pop %v274
    %v276 = vmul.f32 %v273, %v275
    %s277 = scalar_lea.vmem %s7, 80
    %v278 = vld [vmem:[%s277] sm:$0xff]
    %v279 = vmul.f32 %v276, %v278
    %s280 = scalar_lea.vmem %s7, 88
    %v281 = vld [vmem:[%s280] sm:$0xff]
    %v282 = vadd.f32 %v279, %v281
    %v283 = vmul.f32 %v282, 0.2
    %v284 = vmax.f32 %v282, %v283
    %s285 = scalar_lea.vmem %s7, 96
    %v286 = vld [vmem:[%s285] sm:$0xff]
    %v287 = vmul.f32 %v284, %v286
    %v288 = vsel %vm251, %v287, 0.0
    %289 = vadd.xlane.f32.xlu0 %v288
    %v290 = vpop.xlane.xlu0 %289
    %v291 = vadd.f32 %v290, %v174
    %v292 = vld [vmem:[%s4] sm:$0xff]
    %v293 = vld [vmem:[%s4 + $0x8] sm:$0xff]
    %s294 = scalar_lea.vmem %s7, 104
    %v295 = vld [vmem:[%s294] sm:$0xff]
    %v297 = vsel %vm251, %v284, 0
    %299 = vmatprep.subr.mxu0 0.0
    %300 = vmatpush1.msra.mxu0 %v292
    %301 = vmatprep.subr.mxu0 0.0
    %302 = vmatpush1.msra.mxu0 %v293
    %303 = vmatprep.subr.mxu0 0.0
    %304 = vmatpush1.msra.mxu0 0.0
    %305 = vmatprep.subr.mxu0 0.0
    %306 = vmatpush1.msra.mxu0 0.0
    %307 = vmatprep.subr.mxu0 0.0
    %308 = vmatpush1.msra.mxu0 0.0
    %309 = vmatprep.subr.mxu0 0.0
    %310 = vmatpush1.msra.mxu0 0.0
    %311 = vmatprep.subr.mxu0 0.0
    %312 = vmatpush1.msra.mxu0 0.0
    %313 = vmatprep.subr.mxu0 0.0
    %314 = vmatpush1.msra.mxu0 0.0
    %315 = vmatprep.subr.mxu0 0.0
    %316 = vmatpush1.msra.mxu0 0.0
    %317 = vmatprep.subr.mxu0 0.0
    %318 = vmatpush1.msra.mxu0 0.0
    %319 = vmatprep.subr.mxu0 0.0
    %320 = vmatpush1.msra.mxu0 0.0
    %321 = vmatprep.subr.mxu0 0.0
    %322 = vmatpush1.msra.mxu0 0.0
    %323 = vmatprep.subr.mxu0 0.0
    %324 = vmatpush1.msra.mxu0 0.0
    %325 = vmatprep.subr.mxu0 0.0
    %326 = vmatpush1.msra.mxu0 0.0
    %327 = vmatprep.subr.mxu0 0.0
    %328 = vmatpush1.msra.mxu0 0.0
    %329 = vmatprep.subr.mxu0 0.0
    %330 = vmatpush1.msra.mxu0 0.0
    %331 = vmatprep.subr.mxu0 0.0
    %332 = vmatpush1.msra.mxu0 0.0
    %333 = vmatprep.subr.mxu0 0.0
    %334 = vmatpush1.msra.mxu0 0.0
    %335 = vmatprep.subr.mxu0 0.0
    %336 = vmatpush1.msra.mxu0 0.0
    %337 = vmatprep.subr.mxu0 0.0
    %338 = vmatpush1.msra.mxu0 0.0
    %339 = vmatprep.subr.mxu0 0.0
    %340 = vmatpush1.msra.mxu0 0.0
    %341 = vmatprep.subr.mxu0 0.0
    %342 = vmatpush1.msra.mxu0 0.0
    %343 = vmatprep.subr.mxu0 0.0
    %344 = vmatpush1.msra.mxu0 0.0
    %345 = vmatprep.subr.mxu0 0.0
    %346 = vmatpush1.msra.mxu0 0.0
    %347 = vmatprep.subr.mxu0 0.0
    %348 = vmatpush1.msra.mxu0 0.0
    %349 = vmatprep.subr.mxu0 0.0
    %350 = vmatpush1.msra.mxu0 0.0
    %351 = vmatprep.subr.mxu0 0.0
    %352 = vmatpush1.msra.mxu0 0.0
    %353 = vmatprep.subr.mxu0 0.0
    %354 = vmatpush1.msra.mxu0 0.0
    %355 = vmatprep.subr.mxu0 0.0
    %356 = vmatpush1.msra.mxu0 0.0
    %357 = vmatprep.subr.mxu0 0.0
    %358 = vmatpush1.msra.mxu0 0.0
    %359 = vmatprep.subr.mxu0 0.0
    %360 = vmatpush1.msra.mxu0 0.0
    %361 = vmatprep.subr.mxu0 0.0
    %362 = vmatpush1.msra.mxu0 0.0
    %363 = vmatprep.mubr.f32.mxu0 0.0
    %364 = vmatmul.mubr.f32.gmra.mrb[0].mxu0 %v297
    %v365 = vpop.f32.mrb[0].mxu0
    %v366 = vadd.f32 %v295, %v365
    %v367 = vpop.f32.mrb[0].mxu0
    %368 = vdwg.mxu0
    %vm369 = vcmask 261120
    %v370 = vsel %vm369, %v366, 0.0
    %v371 = vrot.slane %v370, 4
    %v372 = vadd.f32 %v370, %v371
    %v373 = vrot.slane %v372, 2
    %v374 = vadd.f32 %v372, %v373
    %v375 = vrot.slane %v374, 1
    %v376 = vadd.f32 %v374, %v375
    %v377 = vmul.f32 %v376, %v259
    %v378 = vmul.f32 %v366, %v366
    %v379 = vsel %vm369, %v378, 0.0
    %v380 = vrot.slane %v379, 4
    %v381 = vadd.f32 %v379, %v380
    %v382 = vrot.slane %v381, 2
    %v383 = vadd.f32 %v381, %v382
    %v384 = vrot.slane %v383, 1
    %v385 = vadd.f32 %v383, %v384
    %v386 = vmul.f32 %v385, %v259
    %v387 = vmul.f32 %v377, %v377
    %v388 = vsub.f32 %v386, %v387
    %v389 = vmax.f32 %v388, 0.0
    %v390 = vsub.f32 %v366, %v377
    %v391 = vadd.f32 %v389, 1e-05
    %v392 = vrsqrt.pop %v391
    %v393 = vmul.f32 %v390, %v392
    %s394 = scalar_lea.vmem %s7, 112
    %v395 = vld [vmem:[%s394] sm:$0xff]
    %v396 = vmul.f32 %v393, %v395
    %s397 = scalar_lea.vmem %s7, 120
    %v398 = vld [vmem:[%s397] sm:$0xff]
    %v399 = vadd.f32 %v396, %v398
    %v400 = vmul.f32 %v399, 0.2
    %v401 = vmax.f32 %v399, %v400
    %s402 = smul.u32 4, 98
    %s403 = smul.u32 %s402, 1
    %s404 = sshll.u32 %s403, 4
    %405 = dma.done [#allocation3], %s404
    %s406 = scalar_lea.vmem %s7, 24
    %v407 = vld [vmem:[%s406] sm:$0xff]
    %v408 = vld [vmem:[%s1] sm:$0xff]
    %v409 = vld [vmem:[%s1 + $0x8] sm:$0xff]
    %v410 = vld [vmem:[%s1 + $0x10] sm:$0xff]
    %v411 = vld [vmem:[%s1 + $0x18] sm:$0xf]
    %v412 = vld [vmem:[#allocation2] sm:$0xff]
    %v413 = vld [vmem:[#allocation2 + $0x8] sm:$0xff]
    %v414 = vld [vmem:[#allocation2 + $0x10] sm:$0xff]
    %v415 = vld [vmem:[#allocation2 + $0x18] sm:$0xff]
    %v416 = vld [vmem:[#allocation2 + $0x20] sm:$0xff]
    %v417 = vld [vmem:[#allocation2 + $0x28] sm:$0xff]
    %v418 = vld [vmem:[#allocation2 + $0x30] sm:$0xff]
    %v419 = vld [vmem:[#allocation2 + $0x38] sm:$0xff]
    %v420 = vld [vmem:[#allocation2 + $0x40] sm:$0xff]
    %v421 = vld [vmem:[#allocation2 + $0x48] sm:$0xff]
    %v422 = vld [vmem:[#allocation2 + $0x50] sm:$0xff]
    %v423 = vld [vmem:[#allocation2 + $0x58] sm:$0xff]
    %v424 = vld [vmem:[#allocation2 + $0x60] sm:$0xff]
    %v425 = vld [vmem:[#allocation2 + $0x68] sm:$0xff]
    %v426 = vld [vmem:[#allocation2 + $0x70] sm:$0xff]
    %v427 = vld [vmem:[#allocation2 + $0x78] sm:$0xff]
    %v428 = vld [vmem:[#allocation2 + $0x80] sm:$0xff]
    %v429 = vld [vmem:[#allocation2 + $0x88] sm:$0xff]
    %v430 = vld [vmem:[#allocation2 + $0x90] sm:$0xff]
    %v431 = vld [vmem:[#allocation2 + $0x98] sm:$0xff]
    %v432 = vld [vmem:[#allocation2 + $0xa0] sm:$0xff]
    %v433 = vld [vmem:[#allocation2 + $0xa8] sm:$0xff]
    %v434 = vld [vmem:[#allocation2 + $0xb0] sm:$0xff]
    %v435 = vld [vmem:[#allocation2 + $0xb8] sm:$0xff]
    %v436 = vld [vmem:[#allocation2 + $0xc0] sm:$0xff]
    %v437 = vld [vmem:[#allocation2 + $0xc8] sm:$0xff]
    %v438 = vld [vmem:[#allocation2 + $0xd0] sm:$0xff]
    %v439 = vld [vmem:[#allocation2 + $0xd8] sm:$0xff]
    %v440 = vld [vmem:[#allocation2 + $0xe0] sm:$0xff]
    %v441 = vld [vmem:[#allocation2 + $0xe8] sm:$0xff]
    %v442 = vld [vmem:[#allocation2 + $0xf0] sm:$0xff]
    %v443 = vld [vmem:[#allocation2 + $0xf8] sm:$0xff]
    %v444 = vld [vmem:[#allocation2 + $0x100] sm:$0xff]
    %v445 = vld [vmem:[#allocation2 + $0x108] sm:$0xff]
    %v446 = vld [vmem:[#allocation2 + $0x110] sm:$0xff]
    %v447 = vld [vmem:[#allocation2 + $0x118] sm:$0xff]
    %v448 = vld [vmem:[#allocation2 + $0x120] sm:$0xff]
    %v449 = vld [vmem:[#allocation2 + $0x128] sm:$0xff]
    %v450 = vld [vmem:[#allocation2 + $0x130] sm:$0xff]
    %v451 = vld [vmem:[#allocation2 + $0x138] sm:$0xff]
    %v452 = vld [vmem:[#allocation2 + $0x140] sm:$0xff]
    %v453 = vld [vmem:[#allocation2 + $0x148] sm:$0xff]
    %v454 = vld [vmem:[#allocation2 + $0x150] sm:$0xff]
    %v455 = vld [vmem:[#allocation2 + $0x158] sm:$0xff]
    %v456 = vld [vmem:[#allocation2 + $0x160] sm:$0xff]
    %v457 = vld [vmem:[#allocation2 + $0x168] sm:$0xff]
    %v458 = vld [vmem:[#allocation2 + $0x170] sm:$0xff]
    %v459 = vld [vmem:[#allocation2 + $0x178] sm:$0xff]
    %v460 = vld [vmem:[#allocation2 + $0x180] sm:$0xff]
    %v461 = vld [vmem:[%s7] sm:$0xff]
    %v466 = vunpack.c.l.b16 %v408
    %v467 = vunpack.c.h.b16 %v408
    %v468 = vunpack.c.l.b16 %v409
    %v469 = vunpack.c.h.b16 %v409
    %v470 = vunpack.c.l.b16 %v410
    %v471 = vunpack.c.h.b16 %v410
    %v472 = vunpack.c.l.b16 %v411
    %v473 = vpack.c.b16 %v466, %v466
    %v474 = vpack.c.b16 %v467, %v467
    %v475 = vpack.c.b16 %v468, %v468
    %v476 = vpack.c.b16 %v469, %v469
    %v477 = vpack.c.b16 %v470, %v470
    %v478 = vpack.c.b16 %v471, %v471
    %v479 = vpack.c.b16 %v472, %v472
    %v487 = vsel %vm251, %v479, 0
    %489 = vmatprep.subr.bf16.mxu0 0
    %490 = vmatpush1.bf16.msra.mxu0 %v412
    %491 = vmatprep.subr.bf16.mxu0 0
    %492 = vmatpush1.bf16.msra.mxu0 %v413
    %493 = vmatprep.subr.bf16.mxu0 0
    %494 = vmatpush1.bf16.msra.mxu0 %v414
    %495 = vmatprep.subr.bf16.mxu0 0
    %496 = vmatpush1.bf16.msra.mxu0 %v415
    %497 = vmatprep.subr.bf16.mxu0 0
    %498 = vmatpush1.bf16.msra.mxu0 %v416
    %499 = vmatprep.subr.bf16.mxu0 0
    %500 = vmatpush1.bf16.msra.mxu0 %v417
    %501 = vmatprep.subr.bf16.mxu0 0
    %502 = vmatpush1.bf16.msra.mxu0 %v418
    %503 = vmatprep.subr.bf16.mxu0 0
    %504 = vmatpush1.bf16.msra.mxu0 %v419
    %505 = vmatprep.subr.bf16.mxu0 0
    %506 = vmatpush1.bf16.msra.mxu0 %v420
    %507 = vmatprep.subr.bf16.mxu0 0
    %508 = vmatpush1.bf16.msra.mxu0 %v421
    %509 = vmatprep.subr.bf16.mxu0 0
    %510 = vmatpush1.bf16.msra.mxu0 %v422
    %511 = vmatprep.subr.bf16.mxu0 0
    %512 = vmatpush1.bf16.msra.mxu0 %v423
    %513 = vmatprep.subr.bf16.mxu0 0
    %514 = vmatpush1.bf16.msra.mxu0 %v424
    %515 = vmatprep.subr.bf16.mxu0 0
    %516 = vmatpush1.bf16.msra.mxu0 %v425
    %517 = vmatprep.subr.bf16.mxu0 0
    %518 = vmatpush1.bf16.msra.mxu0 %v426
    %519 = vmatprep.subr.bf16.mxu0 0
    %520 = vmatpush1.bf16.msra.mxu0 %v427
    %521 = vmatprep.mubr.bf16.mxu0 %v474
    %522 = vmatmul.mubr.bf16.gmra.mrb[0].mxu0 %v473
    %v523 = vpop.f32.mrb[0].mxu0
    %v524 = vadd.f32 %v461, %v523
    %v525 = vpop.f32.mrb[0].mxu0
    %v526 = vpop.f32.mrb[0].mxu0
    %v527 = vpop.f32.mrb[0].mxu0
    %528 = vdwg.mxu0
    %529 = vmatprep.subr.bf16.mxu0 0
    %530 = vmatpush1.bf16.msra.mxu0 %v428
    %531 = vmatprep.subr.bf16.mxu0 0
    %532 = vmatpush1.bf16.msra.mxu0 %v429
    %533 = vmatprep.subr.bf16.mxu0 0
    %534 = vmatpush1.bf16.msra.mxu0 %v430
    %535 = vmatprep.subr.bf16.mxu0 0
    %536 = vmatpush1.bf16.msra.mxu0 %v431
    %537 = vmatprep.subr.bf16.mxu0 0
    %538 = vmatpush1.bf16.msra.mxu0 %v432
    %539 = vmatprep.subr.bf16.mxu0 0
    %540 = vmatpush1.bf16.msra.mxu0 %v433
    %541 = vmatprep.subr.bf16.mxu0 0
    %542 = vmatpush1.bf16.msra.mxu0 %v434
    %543 = vmatprep.subr.bf16.mxu0 0
    %544 = vmatpush1.bf16.msra.mxu0 %v435
    %545 = vmatprep.subr.bf16.mxu0 0
    %546 = vmatpush1.bf16.msra.mxu0 %v436
    %547 = vmatprep.subr.bf16.mxu0 0
    %548 = vmatpush1.bf16.msra.mxu0 %v437
    %549 = vmatprep.subr.bf16.mxu0 0
    %550 = vmatpush1.bf16.msra.mxu0 %v438
    %551 = vmatprep.subr.bf16.mxu0 0
    %552 = vmatpush1.bf16.msra.mxu0 %v439
    %553 = vmatprep.subr.bf16.mxu0 0
    %554 = vmatpush1.bf16.msra.mxu0 %v440
    %555 = vmatprep.subr.bf16.mxu0 0
    %556 = vmatpush1.bf16.msra.mxu0 %v441
    %557 = vmatprep.subr.bf16.mxu0 0
    %558 = vmatpush1.bf16.msra.mxu0 %v442
    %559 = vmatprep.subr.bf16.mxu0 0
    %560 = vmatpush1.bf16.msra.mxu0 %v443
    %561 = vmatprep.mubr.bf16.mxu0 %v476
    %562 = vmatmul.mubr.bf16.gmra.mrb[0].mxu0 %v475
    %v563 = vpop.f32.mrb[0].mxu0
    %v564 = vadd.f32 %v524, %v563
    %v565 = vpop.f32.mrb[0].mxu0
    %v566 = vpop.f32.mrb[0].mxu0
    %v567 = vpop.f32.mrb[0].mxu0
    %568 = vdwg.mxu0
    %569 = vmatprep.subr.bf16.mxu0 0
    %570 = vmatpush1.bf16.msra.mxu0 %v444
    %571 = vmatprep.subr.bf16.mxu0 0
    %572 = vmatpush1.bf16.msra.mxu0 %v445
    %573 = vmatprep.subr.bf16.mxu0 0
    %574 = vmatpush1.bf16.msra.mxu0 %v446
    %575 = vmatprep.subr.bf16.mxu0 0
    %576 = vmatpush1.bf16.msra.mxu0 %v447
    %577 = vmatprep.subr.bf16.mxu0 0
    %578 = vmatpush1.bf16.msra.mxu0 %v448
    %579 = vmatprep.subr.bf16.mxu0 0
    %580 = vmatpush1.bf16.msra.mxu0 %v449
    %581 = vmatprep.subr.bf16.mxu0 0
    %582 = vmatpush1.bf16.msra.mxu0 %v450
    %583 = vmatprep.subr.bf16.mxu0 0
    %584 = vmatpush1.bf16.msra.mxu0 %v451
    %585 = vmatprep.subr.bf16.mxu0 0
    %586 = vmatpush1.bf16.msra.mxu0 %v452
    %587 = vmatprep.subr.bf16.mxu0 0
    %588 = vmatpush1.bf16.msra.mxu0 %v453
    %589 = vmatprep.subr.bf16.mxu0 0
    %590 = vmatpush1.bf16.msra.mxu0 %v454
    %591 = vmatprep.subr.bf16.mxu0 0
    %592 = vmatpush1.bf16.msra.mxu0 %v455
    %593 = vmatprep.subr.bf16.mxu0 0
    %594 = vmatpush1.bf16.msra.mxu0 %v456
    %595 = vmatprep.subr.bf16.mxu0 0
    %596 = vmatpush1.bf16.msra.mxu0 %v457
    %597 = vmatprep.subr.bf16.mxu0 0
    %598 = vmatpush1.bf16.msra.mxu0 %v458
    %599 = vmatprep.subr.bf16.mxu0 0
    %600 = vmatpush1.bf16.msra.mxu0 %v459
    %601 = vmatprep.mubr.bf16.mxu0 %v478
    %602 = vmatmul.mubr.bf16.gmra.mrb[0].mxu0 %v477
    %v603 = vpop.f32.mrb[0].mxu0
    %v604 = vadd.f32 %v564, %v603
    %v605 = vpop.f32.mrb[0].mxu0
    %v606 = vpop.f32.mrb[0].mxu0
    %v607 = vpop.f32.mrb[0].mxu0
    %608 = vdwg.mxu0
    %609 = vmatprep.subr.bf16.mxu0 0
    %610 = vmatpush1.bf16.msra.mxu0 %v460
    %611 = vmatprep.subr.bf16.mxu0 0
    %612 = vmatpush1.bf16.msra.mxu0 0
    %613 = vmatprep.subr.bf16.mxu0 0
    %614 = vmatpush1.bf16.msra.mxu0 0
    %615 = vmatprep.subr.bf16.mxu0 0
    %616 = vmatpush1.bf16.msra.mxu0 0
    %617 = vmatprep.subr.bf16.mxu0 0
    %618 = vmatpush1.bf16.msra.mxu0 0
    %619 = vmatprep.subr.bf16.mxu0 0
    %620 = vmatpush1.bf16.msra.mxu0 0
    %621 = vmatprep.subr.bf16.mxu0 0
    %622 = vmatpush1.bf16.msra.mxu0 0
    %623 = vmatprep.subr.bf16.mxu0 0
    %624 = vmatpush1.bf16.msra.mxu0 0
    %625 = vmatprep.subr.bf16.mxu0 0
    %626 = vmatpush1.bf16.msra.mxu0 0
    %627 = vmatprep.subr.bf16.mxu0 0
    %628 = vmatpush1.bf16.msra.mxu0 0
    %629 = vmatprep.subr.bf16.mxu0 0
    %630 = vmatpush1.bf16.msra.mxu0 0
    %631 = vmatprep.subr.bf16.mxu0 0
    %632 = vmatpush1.bf16.msra.mxu0 0
    %633 = vmatprep.subr.bf16.mxu0 0
    %634 = vmatpush1.bf16.msra.mxu0 0
    %635 = vmatprep.subr.bf16.mxu0 0
    %636 = vmatpush1.bf16.msra.mxu0 0
    %637 = vmatprep.subr.bf16.mxu0 0
    %638 = vmatpush1.bf16.msra.mxu0 0
    %639 = vmatprep.subr.bf16.mxu0 0
    %640 = vmatpush1.bf16.msra.mxu0 0
    %641 = vmatprep.mubr.bf16.mxu0 0
    %642 = vmatmul.mubr.bf16.gmra.mrb[0].mxu0 %v487
    %v643 = vpop.f32.mrb[0].mxu0
    %v644 = vadd.f32 %v604, %v643
    %v645 = vpop.f32.mrb[0].mxu0
    %v646 = vpop.f32.mrb[0].mxu0
    %v647 = vpop.f32.mrb[0].mxu0
    %648 = vdwg.mxu0
    %vm649 = vcmask 523264
    %v650 = vsel %vm649, %v644, 0.0
    %v651 = vrot.slane %v650, 4
    %v652 = vadd.f32 %v650, %v651
    %v653 = vrot.slane %v652, 2
    %v654 = vadd.f32 %v652, %v653
    %v655 = vrot.slane %v654, 1
    %v656 = vadd.f32 %v654, %v655
    %v657 = vmul.f32 %v656, %v259
    %v658 = vmul.f32 %v644, %v644
    %v659 = vsel %vm649, %v658, 0.0
    %v660 = vrot.slane %v659, 4
    %v661 = vadd.f32 %v659, %v660
    %v662 = vrot.slane %v661, 2
    %v663 = vadd.f32 %v661, %v662
    %v664 = vrot.slane %v663, 1
    %v665 = vadd.f32 %v663, %v664
    %v666 = vmul.f32 %v665, %v259
    %v667 = vmul.f32 %v657, %v657
    %v668 = vsub.f32 %v666, %v667
    %v669 = vmax.f32 %v668, 0.0
    %v670 = vsub.f32 %v644, %v657
    %v671 = vadd.f32 %v669, 1e-05
    %v672 = vrsqrt.pop %v671
    %v673 = vmul.f32 %v670, %v672
    %s674 = scalar_lea.vmem %s7, 8
    %v675 = vld [vmem:[%s674] sm:$0xff]
    %v676 = vmul.f32 %v673, %v675
    %s677 = scalar_lea.vmem %s7, 16
    %v678 = vld [vmem:[%s677] sm:$0xff]
    %v679 = vadd.f32 %v676, %v678
    %v680 = vmul.f32 %v407, %v679
    %v681 = vmax.f32 %v679, %v680
    %v682 = vld [vmem:[%s5] sm:$0xff]
    %v683 = vld [vmem:[%s5 + $0x8] sm:$0xff]
    %v684 = vld [vmem:[%s5 + $0x10] sm:$0xff]
    %v685 = vld [vmem:[%s5 + $0x18] sm:$0xff]
    %v686 = vld [vmem:[%s5 + $0x20] sm:$0xff]
    %v687 = vld [vmem:[%s5 + $0x28] sm:$0xff]
    %v688 = vld [vmem:[%s5 + $0x30] sm:$0xff]
    %v689 = vld [vmem:[%s5 + $0x38] sm:$0xff]
    %s690 = scalar_lea.vmem %s7, 32
    %v691 = vld [vmem:[%s690] sm:$0xff]
    %v693 = vsel %vm649, %v681, 0
    %695 = vmatprep.subr.mxu0 0.0
    %696 = vmatpush1.msra.mxu0 %v682
    %697 = vmatprep.subr.mxu0 0.0
    %698 = vmatpush1.msra.mxu0 %v683
    %699 = vmatprep.subr.mxu0 0.0
    %700 = vmatpush1.msra.mxu0 %v684
    %701 = vmatprep.subr.mxu0 0.0
    %702 = vmatpush1.msra.mxu0 %v685
    %703 = vmatprep.subr.mxu0 0.0
    %704 = vmatpush1.msra.mxu0 %v686
    %705 = vmatprep.subr.mxu0 0.0
    %706 = vmatpush1.msra.mxu0 %v687
    %707 = vmatprep.subr.mxu0 0.0
    %708 = vmatpush1.msra.mxu0 %v688
    %709 = vmatprep.subr.mxu0 0.0
    %710 = vmatpush1.msra.mxu0 %v689
    %711 = vmatprep.subr.mxu0 0.0
    %712 = vmatpush1.msra.mxu0 0.0
    %713 = vmatprep.subr.mxu0 0.0
    %714 = vmatpush1.msra.mxu0 0.0
    %715 = vmatprep.subr.mxu0 0.0
    %716 = vmatpush1.msra.mxu0 0.0
    %717 = vmatprep.subr.mxu0 0.0
    %718 = vmatpush1.msra.mxu0 0.0
    %719 = vmatprep.subr.mxu0 0.0
    %720 = vmatpush1.msra.mxu0 0.0
    %721 = vmatprep.subr.mxu0 0.0
    %722 = vmatpush1.msra.mxu0 0.0
    %723 = vmatprep.subr.mxu0 0.0
    %724 = vmatpush1.msra.mxu0 0.0
    %725 = vmatprep.subr.mxu0 0.0
    %726 = vmatpush1.msra.mxu0 0.0
    %727 = vmatprep.subr.mxu0 0.0
    %728 = vmatpush1.msra.mxu0 0.0
    %729 = vmatprep.subr.mxu0 0.0
    %730 = vmatpush1.msra.mxu0 0.0
    %731 = vmatprep.subr.mxu0 0.0
    %732 = vmatpush1.msra.mxu0 0.0
    %733 = vmatprep.subr.mxu0 0.0
    %734 = vmatpush1.msra.mxu0 0.0
    %735 = vmatprep.subr.mxu0 0.0
    %736 = vmatpush1.msra.mxu0 0.0
    %737 = vmatprep.subr.mxu0 0.0
    %738 = vmatpush1.msra.mxu0 0.0
    %739 = vmatprep.subr.mxu0 0.0
    %740 = vmatpush1.msra.mxu0 0.0
    %741 = vmatprep.subr.mxu0 0.0
    %742 = vmatpush1.msra.mxu0 0.0
    %743 = vmatprep.subr.mxu0 0.0
    %744 = vmatpush1.msra.mxu0 0.0
    %745 = vmatprep.subr.mxu0 0.0
    %746 = vmatpush1.msra.mxu0 0.0
    %747 = vmatprep.subr.mxu0 0.0
    %748 = vmatpush1.msra.mxu0 0.0
    %749 = vmatprep.subr.mxu0 0.0
    %750 = vmatpush1.msra.mxu0 0.0
    %751 = vmatprep.subr.mxu0 0.0
    %752 = vmatpush1.msra.mxu0 0.0
    %753 = vmatprep.subr.mxu0 0.0
    %754 = vmatpush1.msra.mxu0 0.0
    %755 = vmatprep.subr.mxu0 0.0
    %756 = vmatpush1.msra.mxu0 0.0
    %757 = vmatprep.subr.mxu0 0.0
    %758 = vmatpush1.msra.mxu0 0.0
    %759 = vmatprep.mubr.f32.mxu0 0.0
    %760 = vmatmul.mubr.f32.gmra.mrb[0].mxu0 %v693
    %v761 = vpop.f32.mrb[0].mxu0
    %v762 = vadd.f32 %v691, %v761
    %v763 = vpop.f32.mrb[0].mxu0
    %764 = vdwg.mxu0
    %v765 = vsel %vm649, %v762, 0.0
    %v766 = vrot.slane %v765, 4
    %v767 = vadd.f32 %v765, %v766
    %v768 = vrot.slane %v767, 2
    %v769 = vadd.f32 %v767, %v768
    %v770 = vrot.slane %v769, 1
    %v771 = vadd.f32 %v769, %v770
    %v772 = vmul.f32 %v771, %v259
    %v773 = vmul.f32 %v762, %v762
    %v774 = vsel %vm649, %v773, 0.0
    %v775 = vrot.slane %v774, 4
    %v776 = vadd.f32 %v774, %v775
    %v777 = vrot.slane %v776, 2
    %v778 = vadd.f32 %v776, %v777
    %v779 = vrot.slane %v778, 1
    %v780 = vadd.f32 %v778, %v779
    %v781 = vmul.f32 %v780, %v259
    %v782 = vmul.f32 %v772, %v772
    %v783 = vsub.f32 %v781, %v782
    %v784 = vmax.f32 %v783, 0.0
    %v785 = vsub.f32 %v762, %v772
    %v786 = vadd.f32 %v784, 1e-05
    %v787 = vrsqrt.pop %v786
    %v788 = vmul.f32 %v785, %v787
    %s789 = scalar_lea.vmem %s7, 40
    %v790 = vld [vmem:[%s789] sm:$0xff]
    %v791 = vmul.f32 %v788, %v790
    %s792 = scalar_lea.vmem %s7, 48
    %v793 = vld [vmem:[%s792] sm:$0xff]
    %v794 = vadd.f32 %v791, %v793
    %v795 = vmul.f32 %v407, %v794
    %v796 = vmax.f32 %v794, %v795
    %s797 = scalar_lea.vmem %s7, 56
    %v798 = vld [vmem:[%s797] sm:$0xff]
    %v799 = vmul.f32 %v796, %v798
    %v800 = vsel %vm649, %v799, 0.0
    %801 = vadd.xlane.f32.xlu0 %v800
    %v802 = vpop.xlane.xlu0 %801
    %v803 = vadd.f32 %v802, %v174
    %805 = vrot.lane.b32.xlu0 %v401, 64
    %v806 = vpop.permute.xlu0 %805
    %v808 = vsel %vm649, %v796, %v806
    %v809 = vld [vmem:[%s6] sm:$0xff]
    %v810 = vld [vmem:[%s6 + $0x8] sm:$0xff]
    %v811 = vld [vmem:[%s6 + $0x10] sm:$0xff]
    %v812 = vld [vmem:[%s6 + $0x18] sm:$0xff]
    %v813 = vld [vmem:[%s6 + $0x20] sm:$0xff]
    %v814 = vld [vmem:[%s6 + $0x28] sm:$0xff]
    %v815 = vld [vmem:[%s6 + $0x30] sm:$0xff]
    %v816 = vld [vmem:[%s6 + $0x38] sm:$0xff]
    %v817 = vld [vmem:[%s6 + $0x40] sm:$0xff]
    %v818 = vld [vmem:[%s6 + $0x48] sm:$0xff]
    %v819 = vld [vmem:[%s6 + $0x50] sm:$0xff]
    %v820 = vld [vmem:[%s6 + $0x58] sm:$0xff]
    %s821 = scalar_lea.vmem %s7, 128
    %v822 = vld [vmem:[%s821] sm:$0xff]
    %vm823 = vcmask 785408
    %v825 = vsel %vm823, %v808, 0
    %827 = vmatprep.subr.mxu0 0.0
    %828 = vmatpush1.msra.mxu0 %v809
    %829 = vmatprep.subr.mxu0 0.0
    %830 = vmatpush1.msra.mxu0 %v810
    %831 = vmatprep.subr.mxu0 0.0
    %832 = vmatpush1.msra.mxu0 %v811
    %833 = vmatprep.subr.mxu0 0.0
    %834 = vmatpush1.msra.mxu0 %v812
    %835 = vmatprep.subr.mxu0 0.0
    %836 = vmatpush1.msra.mxu0 %v813
    %837 = vmatprep.subr.mxu0 0.0
    %838 = vmatpush1.msra.mxu0 %v814
    %839 = vmatprep.subr.mxu0 0.0
    %840 = vmatpush1.msra.mxu0 %v815
    %841 = vmatprep.subr.mxu0 0.0
    %842 = vmatpush1.msra.mxu0 %v816
    %843 = vmatprep.subr.mxu0 0.0
    %844 = vmatpush1.msra.mxu0 %v817
    %845 = vmatprep.subr.mxu0 0.0
    %846 = vmatpush1.msra.mxu0 %v818
    %847 = vmatprep.subr.mxu0 0.0
    %848 = vmatpush1.msra.mxu0 %v819
    %849 = vmatprep.subr.mxu0 0.0
    %850 = vmatpush1.msra.mxu0 %v820
    %851 = vmatprep.subr.mxu0 0.0
    %852 = vmatpush1.msra.mxu0 0.0
    %853 = vmatprep.subr.mxu0 0.0
    %854 = vmatpush1.msra.mxu0 0.0
    %855 = vmatprep.subr.mxu0 0.0
    %856 = vmatpush1.msra.mxu0 0.0
    %857 = vmatprep.subr.mxu0 0.0
    %858 = vmatpush1.msra.mxu0 0.0
    %859 = vmatprep.subr.mxu0 0.0
    %860 = vmatpush1.msra.mxu0 0.0
    %861 = vmatprep.subr.mxu0 0.0
    %862 = vmatpush1.msra.mxu0 0.0
    %863 = vmatprep.subr.mxu0 0.0
    %864 = vmatpush1.msra.mxu0 0.0
    %865 = vmatprep.subr.mxu0 0.0
    %866 = vmatpush1.msra.mxu0 0.0
    %867 = vmatprep.subr.mxu0 0.0
    %868 = vmatpush1.msra.mxu0 0.0
    %869 = vmatprep.subr.mxu0 0.0
    %870 = vmatpush1.msra.mxu0 0.0
    %871 = vmatprep.subr.mxu0 0.0
    %872 = vmatpush1.msra.mxu0 0.0
    %873 = vmatprep.subr.mxu0 0.0
    %874 = vmatpush1.msra.mxu0 0.0
    %875 = vmatprep.subr.mxu0 0.0
    %876 = vmatpush1.msra.mxu0 0.0
    %877 = vmatprep.subr.mxu0 0.0
    %878 = vmatpush1.msra.mxu0 0.0
    %879 = vmatprep.subr.mxu0 0.0
    %880 = vmatpush1.msra.mxu0 0.0
    %881 = vmatprep.subr.mxu0 0.0
    %882 = vmatpush1.msra.mxu0 0.0
    %883 = vmatprep.subr.mxu0 0.0
    %884 = vmatpush1.msra.mxu0 0.0
    %885 = vmatprep.subr.mxu0 0.0
    %886 = vmatpush1.msra.mxu0 0.0
    %887 = vmatprep.subr.mxu0 0.0
    %888 = vmatpush1.msra.mxu0 0.0
    %889 = vmatprep.subr.mxu0 0.0
    %890 = vmatpush1.msra.mxu0 0.0
    %891 = vmatprep.mubr.f32.mxu0 0.0
    %892 = vmatmul.mubr.f32.gmra.mrb[0].mxu0 %v825
    %v893 = vpop.f32.mrb[0].mxu0
    %v894 = vadd.f32 %v822, %v893
    %v895 = vpop.f32.mrb[0].mxu0
    %896 = vdwg.mxu0
    %v897 = vsel %vm649, %v894, 0.0
    %v898 = vrot.slane %v897, 4
    %v899 = vadd.f32 %v897, %v898
    %v900 = vrot.slane %v899, 2
    %v901 = vadd.f32 %v899, %v900
    %v902 = vrot.slane %v901, 1
    %v903 = vadd.f32 %v901, %v902
    %v904 = vmul.f32 %v903, %v259
    %v905 = vmul.f32 %v894, %v894
    %v906 = vsel %vm649, %v905, 0.0
    %v907 = vrot.slane %v906, 4
    %v908 = vadd.f32 %v906, %v907
    %v909 = vrot.slane %v908, 2
    %v910 = vadd.f32 %v908, %v909
    %v911 = vrot.slane %v910, 1
    %v912 = vadd.f32 %v910, %v911
    %v913 = vmul.f32 %v912, %v259
    %v914 = vmul.f32 %v904, %v904
    %v915 = vsub.f32 %v913, %v914
    %v916 = vmax.f32 %v915, 0.0
    %v917 = vsub.f32 %v894, %v904
    %v918 = vadd.f32 %v916, 1e-05
    %v919 = vrsqrt.pop %v918
    %v920 = vmul.f32 %v917, %v919
    %s921 = scalar_lea.vmem %s7, 136
    %v922 = vld [vmem:[%s921] sm:$0xff]
    %v923 = vmul.f32 %v920, %v922
    %s924 = scalar_lea.vmem %s7, 144
    %v925 = vld [vmem:[%s924] sm:$0xff]
    %v926 = vadd.f32 %v923, %v925
    %v927 = vmul.f32 %v926, 0.2
    %v928 = vmax.f32 %v926, %v927
    %930 = vrot.lane.b32.xlu0 %v928, 96
    %v931 = vpop.permute.xlu0 %930
    %v933 = vmul.f32 %v928, %v931
    %v934 = vsel %vm369, %v933, 0.0
    %935 = vadd.xlane.f32.xlu0 %v934
    %v936 = vpop.xlane.xlu0 %935
    %v937 = vadd.f32 %v936, %v803
    %939 = vrot.lane.b32.xlu0 %v291, 127
    %v940 = vpop.permute.xlu0 %939
    %v942 = vadd.f32 %v937, %v940
    %v943 = vmul.f32 %v172, 0.5
    %v944 = vsub.f32 %v942, %v943
    %v945 = vxor.u32 %v944, 2147483648
    %v946 = vmul.f32 %v945, 1.442695
    %v947 = vpow.pop %v946
    %v948 = vadd.f32 %v947, 1.0
    %v949 = vrcp.pop %v948
    %v950 = vmul.f32 1.0, %v949
    %v951 = vlaneseq
    %v952 = vshrl.u32 %v951, 7
    %v953 = vlaneseq
    %v954 = vand.u32 %v953, 127
    %vm955 = vcmp.eq.s32.totalorder %v952, %v954
    %v956 = vsel %vm955, 1, 0
    %v957 = vcvt.s32.f32 %v956
    %959 = vset.pattern.permute.xlu0 0
    %960 = vperm.xlu0 %959, %v950
    %v961 = vpop.permute.xlu0 %960
    %v963 = vmul.f32 %v961, %v957
    %v964 = vsel %vm169, %v963, 0.0
    %v965 = vrot.slane %v964, 4
    %v966 = vadd.f32 %v964, %v965
    %v967 = vrot.slane %v966, 2
    %v968 = vadd.f32 %v966, %v967
    %v969 = vrot.slane %v968, 1
    %v970 = vadd.f32 %v968, %v969
    %vm971 = vcmask 57344
    %972 = vst.msk [vmem:[#allocation4] sm:$0x1] %vm971, %v970
    // Predicated region
    $region64: #{tpu_custom_call.1} parent=1 // pred_check
      _
    $region65: #{tpu_custom_call.1} parent=1 // pred_check_branch
      %974 = sbr.rel (0) target = $region67
    $region66: #{tpu_custom_call.1} parent=1 // pred_region
      %s976 = ssub.s32 16, 16
      %977 = vsyncadd [#allocation5], %s976
      %s979 = sshll.u32 [#allocation4], 4
      %s980 = int_to_ptr.vmem [resolvable:$true] %s979
      %982 = dma.vmem_to_hbm [thread:$0]  %s980, 16, %s8, [#allocation5]
    $region67: #{tpu_custom_call.1} parent=1 // pred_fallthru
      _
    // Predicated region
    $region68: #{tpu_custom_call.1} parent=1 // pred_check
      _
    $region69: #{tpu_custom_call.1} parent=1 // pred_check_branch
      %984 = sbr.rel (0) target = $region71
    $region70: #{tpu_custom_call.1} parent=1 // pred_region
      %985 = dma.done [#allocation5], 16
    $region71: #{tpu_custom_call.1} parent=1 // pred_fallthru
      _
    %986 = vsyncpa [#allocation5], 1
  %987 = vsyncmov [#allocation3]
  %s988 = vpop.sfrf %987
  %p989 = scmp.eq.s32.totalorder %s988, 0
  %p990 = pneg %p989
  %992 = shalt.err (%p990)

</llo_original>
